<compile_context>
chip_gen: v5e
topology: v5e:2x2
jax: 0.10.0
libtpu: 0.0.40
codegen_flags: <defaults>
</compile_context>

<pallas_src>
import functools

import jax
import jax.numpy as jnp
from jax.experimental import pallas as pl
from jax.experimental.pallas import tpu as pltpu

# ----- scaled-down bert-base-cased config -----
VOCAB = 64
MAX_POS = 32
TYPE_VOCAB = 2
HIDDEN = 128          # bert-base uses 768; scaled down, kept lane-aligned
HEADS = 4
HEAD_DIM = HIDDEN // HEADS
FFN = 256
LAYERS = 2
NUM_CLASSES = 2
CLS_PAD = 128         # lane-dense classifier width (sliced back to 2 outside)
LN_EPS = 1e-12


# ---------------------------------------------------------------------------
# In-kernel math helpers (traced inside the Pallas kernel, all f32)
# ---------------------------------------------------------------------------
def _layernorm(x, g, b):
    mu = jnp.mean(x, axis=-1, keepdims=True)
    xc = x - mu
    var = jnp.mean(xc * xc, axis=-1, keepdims=True)
    return xc * jax.lax.rsqrt(var + LN_EPS) * g + b


def _gelu(x):  # BERT tanh-approx gelu
    return 0.5 * x * (1.0 + jnp.tanh(0.7978845608028654 * (x + 0.044715 * x * x * x)))


# ---------------------------------------------------------------------------
# Fully fused BERT kernel.
# grid axis = layer index; activation lives in a VMEM scratch across layers;
# pooler + dropout(eval) + classifier + ReLU run on the last grid step only.
# ---------------------------------------------------------------------------
def _bert_kernel(mask_ref, x_ref, eg_ref, eb_ref,
                 wqkv_ref, bqkv_ref, wo_ref, bo_ref,
                 ln1g_ref, ln1b_ref, w1_ref, b1_ref,
                 w2_ref, b2_ref, ln2g_ref, ln2b_ref,
                 wp_ref, bp_ref, wc_ref, bc_ref,
                 o_ref, act_ref, *, batch, seq):
    l = pl.program_id(0)

    # Layer 0: embedding LayerNorm fused in (no separate kernel).
    @pl.when(l == 0)
    def _():
        act_ref[...] = _layernorm(x_ref[...], eg_ref[...], eb_ref[...])

    x2 = act_ref[...]                                          # [B*S, H] VMEM carry

    # ---- fused QKV projection: one bf16 MXU matmul, f32 accumulate ----
    qkv = jnp.dot(x2.astype(jnp.bfloat16), wqkv_ref[...],
                  preferred_element_type=jnp.float32) + bqkv_ref[...]
    scale = 1.0 / (HEAD_DIM ** 0.5)
    q = qkv[:, :HIDDEN] * scale        # scale folded into q, not the SxS scores
    k = qkv[:, HIDDEN:2 * HIDDEN]
    v = qkv[:, 2 * HIDDEN:]

    # additive mask built in-kernel from the tiny [B, S] mask (no HBM bias tensor)
    bias = ((1.0 - mask_ref[...]) * (-1e9))[:, None, :]        # [B, 1, S]

    # per-head attention; matmuls in bf16 (f32 acc), softmax in f32, all in VMEM
    ctx_heads = []
    for h in range(HEADS):
        sl = slice(h * HEAD_DIM, (h + 1) * HEAD_DIM)
        qh = q[:, sl].reshape(batch, seq, HEAD_DIM).astype(jnp.bfloat16)
        kh = k[:, sl].reshape(batch, seq, HEAD_DIM).astype(jnp.bfloat16)
        vh = v[:, sl].reshape(batch, seq, HEAD_DIM).astype(jnp.bfloat16)
        s = jnp.einsum("bqd,bkd->bqk", qh, kh,
                       preferred_element_type=jnp.float32) + bias
        m = jnp.max(s, axis=-1, keepdims=True)
        p = jnp.exp(s - m)
        denom = jnp.sum(p, axis=-1, keepdims=True)
        p = p * pl.reciprocal(denom, approx=True)              # EUP slot, frees VALU
        ctx_h = jnp.einsum("bqk,bkd->bqd", p.astype(jnp.bfloat16), vh,
                           preferred_element_type=jnp.float32)
        ctx_heads.append(ctx_h.reshape(batch * seq, HEAD_DIM))
    ctx = jnp.concatenate(ctx_heads, axis=-1)                  # [B*S, H]

    # ---- attention output projection + residual + LayerNorm (post-LN BERT) ----
    attn_out = jnp.dot(ctx.astype(jnp.bfloat16), wo_ref[...],
                       preferred_element_type=jnp.float32) + bo_ref[...]
    x2 = _layernorm(attn_out + x2, ln1g_ref[...], ln1b_ref[...])

    # ---- FFN (gelu) + residual + LayerNorm ----
    h1 = jnp.dot(x2.astype(jnp.bfloat16), w1_ref[...],
                 preferred_element_type=jnp.float32) + b1_ref[...]
    h1 = _gelu(h1)
    ffn_out = jnp.dot(h1.astype(jnp.bfloat16), w2_ref[...],
                      preferred_element_type=jnp.float32) + b2_ref[...]
    x_new = _layernorm(ffn_out + x2, ln2g_ref[...], ln2b_ref[...])
    act_ref[...] = x_new                                       # carry to next layer

    # ---- final step: pooler(tanh) -> dropout(eval) -> Linear(H,2) -> ReLU ----
    @pl.when(l == LAYERS - 1)
    def _():
        cls = x_new.reshape(batch, seq, HIDDEN)[:, 0, :]       # [B, H] CLS rows
        pooled = jnp.tanh(jnp.dot(cls.astype(jnp.bfloat16), wp_ref[...],
                                  preferred_element_type=jnp.float32) + bp_ref[...])
        # Dropout(p=0.5): identity in eval mode.
        # TODO(synk): training-mode stochastic dropout could use pltpu.prng_seed /
        # pltpu.stateful_bernoulli if training semantics are ever needed.
        logits = jnp.dot(pooled.astype(jnp.bfloat16), wc_ref[...],
                         preferred_element_type=jnp.float32) + bc_ref[...]
        o_ref[...] = jnp.maximum(logits, 0.0)                  # ReLU, [B, 128]


def bert_pallas_forward(x_emb, attn_mask_f32, p):
    """x_emb: [B*S, H] (pre-LN embedding sum), attn_mask_f32: [B, S].
    Returns lane-dense logits [B, CLS_PAD] (slice to 2 classes outside)."""
    bs, h = x_emb.shape
    batch, seq = attn_mask_f32.shape
    kernel = functools.partial(_bert_kernel, batch=batch, seq=seq)

    def full(shape):        # same (only) block every layer
        nd = len(shape)
        return pl.BlockSpec(shape, lambda l, _nd=nd: (0,) * _nd)

    def stack(shape):       # per-layer stacked weights, leading dim squeezed
        return pl.BlockSpec((None,) + shape, lambda l: (l, 0, 0))

    return pl.pallas_call(
        kernel,
        out_shape=jax.ShapeDtypeStruct((batch, CLS_PAD), jnp.float32),
        grid=(LAYERS,),
        in_specs=[
            full((batch, seq)),               # attention mask
            full((bs, h)),                    # embedding sum
            full((1, h)),                     # emb LN gamma
            full((1, h)),                     # emb LN beta
            stack((HIDDEN, 3 * HIDDEN)),      # wqkv  (bf16)
            stack((1, 3 * HIDDEN)),           # bqkv
            stack((HIDDEN, HIDDEN)),          # wo    (bf16)
            stack((1, HIDDEN)),               # bo
            stack((1, HIDDEN)),               # ln1 gamma
            stack((1, HIDDEN)),               # ln1 beta
            stack((HIDDEN, FFN)),             # w1    (bf16)
            stack((1, FFN)),                  # b1
            stack((FFN, HIDDEN)),             # w2    (bf16)
            stack((1, HIDDEN)),               # b2
            stack((1, HIDDEN)),               # ln2 gamma
            stack((1, HIDDEN)),               # ln2 beta
            full((HIDDEN, HIDDEN)),           # pooler W (bf16)
            full((1, HIDDEN)),                # pooler b
            full((HIDDEN, CLS_PAD)),          # classifier W, zero-padded (bf16)
            full((1, CLS_PAD)),               # classifier b, zero-padded
        ],
        out_specs=pl.BlockSpec((batch, CLS_PAD), lambda l: (0, 0)),
        scratch_shapes=[pltpu.VMEM((bs, h), jnp.float32)],     # activation carry
        compiler_params=pltpu.CompilerParams(
            dimension_semantics=("arbitrary",)),               # sequential over layers
    )(attn_mask_f32, x_emb, p["emb_ln_g"], p["emb_ln_b"],
      p["wqkv"], p["bqkv"], p["wo"], p["bo"],
      p["ln1_g"], p["ln1_b"], p["w1"], p["b1"],
      p["w2"], p["b2"], p["ln2_g"], p["ln2_b"],
      p["wp"], p["bp"], p["wc_pad"], p["bc_pad"])


# ---------------------------------------------------------------------------
# Parameter init (deterministic, synthetic); weights stacked per layer,
# MXU operands stored in bf16, biases / LN params in f32.
# ---------------------------------------------------------------------------
def init_params(key):
    keys = jax.random.split(key, 5 + LAYERS)

    def dense(k, fan_in, fan_out):
        kw, kb = jax.random.split(k)
        w = 0.02 * jax.random.normal(kw, (fan_in, fan_out), jnp.float32)
        b = 0.02 * jax.random.normal(kb, (1, fan_out), jnp.float32)
        return w, b

    p = {}
    p["word_emb"] = 0.02 * jax.random.normal(keys[0], (VOCAB, HIDDEN), jnp.float32)
    p["pos_emb"] = 0.02 * jax.random.normal(keys[1], (MAX_POS, HIDDEN), jnp.float32)
    p["type_emb"] = 0.02 * jax.random.normal(keys[2], (TYPE_VOCAB, HIDDEN), jnp.float32)
    p["emb_ln_g"] = jnp.ones((1, HIDDEN), jnp.float32)
    p["emb_ln_b"] = jnp.zeros((1, HIDDEN), jnp.float32)

    wqkv, bqkv, wo, bo, w1, b1, w2, b2 = [], [], [], [], [], [], [], []
    for l in range(LAYERS):
        k = jax.random.split(keys[3 + l], 6)
        wq, bq = dense(k[0], HIDDEN, HIDDEN)
        wk, bk = dense(k[1], HIDDEN, HIDDEN)
        wv, bv = dense(k[2], HIDDEN, HIDDEN)
        wqkv.append(jnp.concatenate([wq, wk, wv], axis=1))     # [H, 3H]
        bqkv.append(jnp.concatenate([bq, bk, bv], axis=1))     # [1, 3H]
        w, b = dense(k[3], HIDDEN, HIDDEN); wo.append(w); bo.append(b)
        w, b = dense(k[4], HIDDEN, FFN);    w1.append(w); b1.append(b)
        w, b = dense(k[5], FFN, HIDDEN);    w2.append(w); b2.append(b)

    p["wqkv"] = jnp.stack(wqkv).astype(jnp.bfloat16)           # [L, H, 3H]
    p["bqkv"] = jnp.stack(bqkv)                                # [L, 1, 3H]
    p["wo"] = jnp.stack(wo).astype(jnp.bfloat16)
    p["bo"] = jnp.stack(bo)
    p["w1"] = jnp.stack(w1).astype(jnp.bfloat16)
    p["b1"] = jnp.stack(b1)
    p["w2"] = jnp.stack(w2).astype(jnp.bfloat16)
    p["b2"] = jnp.stack(b2)
    p["ln1_g"] = jnp.ones((LAYERS, 1, HIDDEN), jnp.float32)
    p["ln1_b"] = jnp.zeros((LAYERS, 1, HIDDEN), jnp.float32)
    p["ln2_g"] = jnp.ones((LAYERS, 1, HIDDEN), jnp.float32)
    p["ln2_b"] = jnp.zeros((LAYERS, 1, HIDDEN), jnp.float32)

    wp, bp = dense(keys[3 + LAYERS], HIDDEN, HIDDEN)           # pooler
    p["wp"] = wp.astype(jnp.bfloat16)
    p["bp"] = bp
    wc, bc = dense(keys[4 + LAYERS], HIDDEN, NUM_CLASSES)      # self.linear (H -> 2)
    # lane-dense classifier: zero-pad [H,2] -> [H,128]; slice [:, :2] in wrapper
    p["wc_pad"] = jnp.zeros((HIDDEN, CLS_PAD), jnp.bfloat16).at[
        :, :NUM_CLASSES].set(wc.astype(jnp.bfloat16))
    p["bc_pad"] = jnp.zeros((1, CLS_PAD), jnp.float32).at[:, :NUM_CLASSES].set(bc)
    return p


# ---------------------------------------------------------------------------
# Forward pass (mirrors BertClassifier.forward, eval mode)
# ---------------------------------------------------------------------------
def bert_classifier_forward(params, input_ids, attention_mask):
    B, S = input_ids.shape

    # embeddings: table gathers are XLA glue; LN is fused into kernel step 0
    x = params["word_emb"][input_ids]                          # [B, S, H]
    x = x + params["pos_emb"][jnp.arange(S)][None, :, :]
    x = x + params["type_emb"][0][None, None, :]               # token_type_ids = 0
    x = x.reshape(B * S, HIDDEN)

    mask_f = attention_mask.astype(jnp.float32)                # [B, S]

    # single fused pallas_call: emb LN + all layers + pooler + classifier + ReLU
    logits_pad = bert_pallas_forward(x, mask_f, params)        # [B, 128]
    return logits_pad[:, :NUM_CLASSES]                         # slice padded lanes


# ---------------------------------------------------------------------------
if __name__ == "__main__":
    key = jax.random.PRNGKey(0)
    kp, kid = jax.random.split(key)

    params = init_params(kp)

    B, S = 2, 8
    input_ids = jax.random.randint(kid, (B, S), 0, VOCAB, dtype=jnp.int32)
    # mask: second sequence has 2 padding tokens at the end
    attention_mask = jnp.array(
        [[1, 1, 1, 1, 1, 1, 1, 1],
         [1, 1, 1, 1, 1, 1, 0, 0]], dtype=jnp.int32)

    fwd = jax.jit(bert_classifier_forward)
    out = fwd(params, input_ids, attention_mask)
    out = jax.block_until_ready(out)

    assert out.shape == (B, NUM_CLASSES)
    assert out.dtype == jnp.float32
    assert bool(jnp.all(out >= 0.0))           # ReLU output
    assert bool(jnp.all(jnp.isfinite(out)))
    print("KERNEL_OK")
</pallas_src>

<mosaic_0001>
module attributes {stable_mosaic.version = 11 : i64} {
  func.func @_bert_kernel(%arg0: i32, %arg1: memref<2x8xf32, #tpu.memory_space<vmem>>, %arg2: memref<16x128xf32, #tpu.memory_space<vmem>>, %arg3: memref<1x128xf32, #tpu.memory_space<vmem>>, %arg4: memref<1x128xf32, #tpu.memory_space<vmem>>, %arg5: memref<1x128x384xbf16, #tpu.memory_space<vmem>>, %arg6: memref<1x1x384xf32, #tpu.memory_space<vmem>>, %arg7: memref<1x128x128xbf16, #tpu.memory_space<vmem>>, %arg8: memref<1x1x128xf32, #tpu.memory_space<vmem>>, %arg9: memref<1x1x128xf32, #tpu.memory_space<vmem>>, %arg10: memref<1x1x128xf32, #tpu.memory_space<vmem>>, %arg11: memref<1x128x256xbf16, #tpu.memory_space<vmem>>, %arg12: memref<1x1x256xf32, #tpu.memory_space<vmem>>, %arg13: memref<1x256x128xbf16, #tpu.memory_space<vmem>>, %arg14: memref<1x1x128xf32, #tpu.memory_space<vmem>>, %arg15: memref<1x1x128xf32, #tpu.memory_space<vmem>>, %arg16: memref<1x1x128xf32, #tpu.memory_space<vmem>>, %arg17: memref<128x128xbf16, #tpu.memory_space<vmem>>, %arg18: memref<1x128xf32, #tpu.memory_space<vmem>>, %arg19: memref<128x128xbf16, #tpu.memory_space<vmem>>, %arg20: memref<1x128xf32, #tpu.memory_space<vmem>>, %arg21: memref<2x128xf32, #tpu.memory_space<vmem>>, %arg22: memref<16x128xf32, #tpu.memory_space<vmem>>) attributes {dimension_semantics = [#tpu.dimension_semantics<arbitrary>], iteration_bounds = array<i64: 2>, scalar_prefetch = 0 : i64, scratch_operands = 1 : i64, tpu.core_type = #tpu.core_type<tc>, window_params = [{pipeline_mode = #tpu.pipeline_mode<synchronous>, transform_indices = @transform_0, window_bounds = array<i64: 2, 8>}, {pipeline_mode = #tpu.pipeline_mode<synchronous>, transform_indices = @transform_1, window_bounds = array<i64: 16, 128>}, {pipeline_mode = #tpu.pipeline_mode<synchronous>, transform_indices = @transform_2, window_bounds = array<i64: 1, 128>}, {pipeline_mode = #tpu.pipeline_mode<synchronous>, transform_indices = @transform_3, window_bounds = array<i64: 1, 128>}, {transform_indices = @transform_4, window_bounds = array<i64: 1, 128, 384>}, {transform_indices = @transform_5, window_bounds = array<i64: 1, 1, 384>}, {transform_indices = @transform_6, window_bounds = array<i64: 1, 128, 128>}, {transform_indices = @transform_7, window_bounds = array<i64: 1, 1, 128>}, {transform_indices = @transform_8, window_bounds = array<i64: 1, 1, 128>}, {transform_indices = @transform_9, window_bounds = array<i64: 1, 1, 128>}, {transform_indices = @transform_10, window_bounds = array<i64: 1, 128, 256>}, {transform_indices = @transform_11, window_bounds = array<i64: 1, 1, 256>}, {transform_indices = @transform_12, window_bounds = array<i64: 1, 256, 128>}, {transform_indices = @transform_13, window_bounds = array<i64: 1, 1, 128>}, {transform_indices = @transform_14, window_bounds = array<i64: 1, 1, 128>}, {transform_indices = @transform_15, window_bounds = array<i64: 1, 1, 128>}, {pipeline_mode = #tpu.pipeline_mode<synchronous>, transform_indices = @transform_16, window_bounds = array<i64: 128, 128>}, {pipeline_mode = #tpu.pipeline_mode<synchronous>, transform_indices = @transform_17, window_bounds = array<i64: 1, 128>}, {pipeline_mode = #tpu.pipeline_mode<synchronous>, transform_indices = @transform_18, window_bounds = array<i64: 128, 128>}, {pipeline_mode = #tpu.pipeline_mode<synchronous>, transform_indices = @transform_19, window_bounds = array<i64: 1, 128>}, {pipeline_mode = #tpu.pipeline_mode<synchronous>, transform_indices = @transform_20, window_bounds = array<i64: 2, 128>}]} {
    %c0_i32 = arith.constant 0 : i32
    %0 = arith.cmpi eq, %arg0, %c0_i32 : i32
    %1 = arith.extui %0 : i1 to i32
    %c0_i32_0 = arith.constant 0 : i32
    %2 = arith.cmpi ne, %1, %c0_i32_0 : i32
    scf.if %2 {
      %c0_79 = arith.constant 0 : index
      %c0_80 = arith.constant 0 : index
      %215 = vector.load %arg2[%c0_79, %c0_80] : memref<16x128xf32, #tpu.memory_space<vmem>>, vector<16x128xf32>
      %c0_81 = arith.constant 0 : index
      %c0_82 = arith.constant 0 : index
      %216 = vector.load %arg3[%c0_81, %c0_82] : memref<1x128xf32, #tpu.memory_space<vmem>>, vector<1x128xf32>
      %c0_83 = arith.constant 0 : index
      %c0_84 = arith.constant 0 : index
      %217 = vector.load %arg4[%c0_83, %c0_84] : memref<1x128xf32, #tpu.memory_space<vmem>>, vector<1x128xf32>
      %cst_85 = arith.constant dense<0.000000e+00> : vector<16xf32>
      %218 = vector.multi_reduction <add>, %215, %cst_85 [1] : vector<16x128xf32> to vector<16xf32>
      %219 = vector.shape_cast %218 : vector<16xf32> to vector<16x1xf32>
      %cst_86 = arith.constant 1.280000e+02 : f32
      %220 = vector.broadcast %cst_86 : f32 to vector<16x1xf32>
      %221 = arith.divf %219, %220 : vector<16x1xf32>
      %222 = vector.broadcast %221 : vector<16x1xf32> to vector<16x128xf32>
      %223 = arith.subf %215, %222 : vector<16x128xf32>
      %224 = arith.mulf %223, %223 : vector<16x128xf32>
      %cst_87 = arith.constant dense<0.000000e+00> : vector<16xf32>
      %225 = vector.multi_reduction <add>, %224, %cst_87 [1] : vector<16x128xf32> to vector<16xf32>
      %226 = vector.shape_cast %225 : vector<16xf32> to vector<16x1xf32>
      %cst_88 = arith.constant 1.280000e+02 : f32
      %227 = vector.broadcast %cst_88 : f32 to vector<16x1xf32>
      %228 = arith.divf %226, %227 : vector<16x1xf32>
      %cst_89 = arith.constant 9.99999996E-13 : f32
      %229 = vector.broadcast %cst_89 : f32 to vector<16x1xf32>
      %230 = arith.addf %228, %229 : vector<16x1xf32>
      %231 = math.rsqrt %230 : vector<16x1xf32>
      %232 = vector.broadcast %231 : vector<16x1xf32> to vector<16x128xf32>
      %233 = arith.mulf %223, %232 : vector<16x128xf32>
      %234 = vector.broadcast %216 : vector<1x128xf32> to vector<16x128xf32>
      %235 = arith.mulf %233, %234 : vector<16x128xf32>
      %236 = vector.broadcast %217 : vector<1x128xf32> to vector<16x128xf32>
      %237 = arith.addf %235, %236 : vector<16x128xf32>
      %c0_90 = arith.constant 0 : index
      %c0_91 = arith.constant 0 : index
      %238 = vector.load %arg22[%c0_90, %c0_91] : memref<16x128xf32, #tpu.memory_space<vmem>>, vector<16x128xf32>
      tpu.vector_store %arg22[%c0_90, %c0_91], %237 {strides = array<i32>} : memref<16x128xf32, #tpu.memory_space<vmem>>, vector<16x128xf32>,
    } else {
    }
    %c0 = arith.constant 0 : index
    %c0_1 = arith.constant 0 : index
    %3 = vector.load %arg22[%c0, %c0_1] : memref<16x128xf32, #tpu.memory_space<vmem>>, vector<16x128xf32>
    %4 = arith.truncf %3 : vector<16x128xf32> to vector<16x128xbf16>
    %c0_2 = arith.constant 0 : index
    %c0_3 = arith.constant 0 : index
    %c0_4 = arith.constant 0 : index
    %5 = vector.load %arg5[%c0_2, %c0_3, %c0_4] : memref<1x128x384xbf16, #tpu.memory_space<vmem>>, vector<1x128x384xbf16>
    %6 = vector.shape_cast %5 : vector<1x128x384xbf16> to vector<128x384xbf16>
    %cst = arith.constant dense<0.000000e+00> : vector<16x384xf32>
    %7 = tpu.matmul %4, %6, %cst {dimension_numbers = #tpu.dot_dimension_numbers<[1], [0], [0], [1], [0, 0, 1, 1], [], []>} : vector<16x128xbf16>, vector<128x384xbf16>, vector<16x384xf32> -> vector<16x384xf32>
    %c0_5 = arith.constant 0 : index
    %c0_6 = arith.constant 0 : index
    %c0_7 = arith.constant 0 : index
    %8 = vector.load %arg6[%c0_5, %c0_6, %c0_7] : memref<1x1x384xf32, #tpu.memory_space<vmem>>, vector<1x1x384xf32>
    %9 = vector.shape_cast %8 : vector<1x1x384xf32> to vector<1x384xf32>
    %10 = vector.broadcast %9 : vector<1x384xf32> to vector<16x384xf32>
    %11 = arith.addf %7, %10 : vector<16x384xf32>
    %12 = vector.extract_strided_slice %11 {offsets = [0, 0], sizes = [16, 128], strides = [1, 1]} : vector<16x384xf32> to vector<16x128xf32>
    %cst_8 = arith.constant 0.176776692 : f32
    %13 = vector.broadcast %cst_8 : f32 to vector<16x128xf32>
    %14 = arith.mulf %12, %13 : vector<16x128xf32>
    %15 = vector.extract_strided_slice %11 {offsets = [0, 128], sizes = [16, 128], strides = [1, 1]} : vector<16x384xf32> to vector<16x128xf32>
    %16 = vector.extract_strided_slice %11 {offsets = [0, 256], sizes = [16, 128], strides = [1, 1]} : vector<16x384xf32> to vector<16x128xf32>
    %c0_9 = arith.constant 0 : index
    %c0_10 = arith.constant 0 : index
    %17 = vector.load %arg1[%c0_9, %c0_10] : memref<2x8xf32, #tpu.memory_space<vmem>>, vector<2x8xf32>
    %cst_11 = arith.constant 1.000000e+00 : f32
    %18 = vector.broadcast %cst_11 : f32 to vector<2x8xf32>
    %19 = arith.subf %18, %17 : vector<2x8xf32>
    %cst_12 = arith.constant -1.000000e+09 : f32
    %20 = vector.broadcast %cst_12 : f32 to vector<2x8xf32>
    %21 = arith.mulf %19, %20 : vector<2x8xf32>
    %22 = vector.shape_cast %21 : vector<2x8xf32> to vector<2x1x8xf32>
    %23 = vector.extract_strided_slice %14 {offsets = [0, 0], sizes = [16, 32], strides = [1, 1]} : vector<16x128xf32> to vector<16x32xf32>
    %24 = vector.shape_cast %23 : vector<16x32xf32> to vector<2x8x32xf32>
    %25 = arith.truncf %24 : vector<2x8x32xf32> to vector<2x8x32xbf16>
    %26 = vector.extract_strided_slice %15 {offsets = [0, 0], sizes = [16, 32], strides = [1, 1]} : vector<16x128xf32> to vector<16x32xf32>
    %27 = vector.shape_cast %26 : vector<16x32xf32> to vector<2x8x32xf32>
    %28 = arith.truncf %27 : vector<2x8x32xf32> to vector<2x8x32xbf16>
    %29 = vector.extract_strided_slice %16 {offsets = [0, 0], sizes = [16, 32], strides = [1, 1]} : vector<16x128xf32> to vector<16x32xf32>
    %30 = vector.shape_cast %29 : vector<16x32xf32> to vector<2x8x32xf32>
    %31 = arith.truncf %30 : vector<2x8x32xf32> to vector<2x8x32xbf16>
    "tpu.trace_start"() <{level = 10 : i32, message = "bqd,bkd->bqk"}> : () -> ()
    %cst_13 = arith.constant dense<0.000000e+00> : vector<2x8x8xf32>
    %32 = tpu.matmul %25, %28, %cst_13 {dimension_numbers = #tpu.dot_dimension_numbers<[2], [2], [1], [1], [0, 0, 0, 1, 1, 1], [0], [0]>} : vector<2x8x32xbf16>, vector<2x8x32xbf16>, vector<2x8x8xf32> -> vector<2x8x8xf32>
    "tpu.trace_stop"() : () -> ()
    %33 = vector.broadcast %22 : vector<2x1x8xf32> to vector<2x8x8xf32>
    %34 = arith.addf %32, %33 : vector<2x8x8xf32>
    %cst_14 = arith.constant dense<0xFF800000> : vector<2x8xf32>
    %35 = vector.multi_reduction <maximumf>, %34, %cst_14 [2] : vector<2x8x8xf32> to vector<2x8xf32>
    %36 = vector.shape_cast %35 : vector<2x8xf32> to vector<2x8x1xf32>
    %37 = vector.broadcast %36 : vector<2x8x1xf32> to vector<2x8x8xf32>
    %38 = arith.subf %34, %37 : vector<2x8x8xf32>
    %39 = math.exp %38 : vector<2x8x8xf32>
    %cst_15 = arith.constant dense<0.000000e+00> : vector<2x8xf32>
    %40 = vector.multi_reduction <add>, %39, %cst_15 [2] : vector<2x8x8xf32> to vector<2x8xf32>
    %41 = vector.shape_cast %40 : vector<2x8xf32> to vector<2x8x1xf32>
    %42 = tpu.reciprocal %41 {approx = true} : vector<2x8x1xf32> -> vector<2x8x1xf32>
    %43 = vector.broadcast %42 : vector<2x8x1xf32> to vector<2x8x8xf32>
    %44 = arith.mulf %39, %43 : vector<2x8x8xf32>
    %45 = arith.truncf %44 : vector<2x8x8xf32> to vector<2x8x8xbf16>
    "tpu.trace_start"() <{level = 10 : i32, message = "bqk,bkd->bqd"}> : () -> ()
    %cst_16 = arith.constant dense<0.000000e+00> : vector<2x8x32xf32>
    %46 = tpu.matmul %45, %31, %cst_16 {dimension_numbers = #tpu.dot_dimension_numbers<[2], [1], [1], [2], [0, 0, 0, 1, 1, 2], [0], [0]>} : vector<2x8x8xbf16>, vector<2x8x32xbf16>, vector<2x8x32xf32> -> vector<2x8x32xf32>
    "tpu.trace_stop"() : () -> ()
    %47 = vector.shape_cast %46 : vector<2x8x32xf32> to vector<16x32xf32>
    %48 = vector.extract_strided_slice %14 {offsets = [0, 32], sizes = [16, 32], strides = [1, 1]} : vector<16x128xf32> to vector<16x32xf32>
    %49 = vector.shape_cast %48 : vector<16x32xf32> to vector<2x8x32xf32>
    %50 = arith.truncf %49 : vector<2x8x32xf32> to vector<2x8x32xbf16>
    %51 = vector.extract_strided_slice %15 {offsets = [0, 32], sizes = [16, 32], strides = [1, 1]} : vector<16x128xf32> to vector<16x32xf32>
    %52 = vector.shape_cast %51 : vector<16x32xf32> to vector<2x8x32xf32>
    %53 = arith.truncf %52 : vector<2x8x32xf32> to vector<2x8x32xbf16>
    %54 = vector.extract_strided_slice %16 {offsets = [0, 32], sizes = [16, 32], strides = [1, 1]} : vector<16x128xf32> to vector<16x32xf32>
    %55 = vector.shape_cast %54 : vector<16x32xf32> to vector<2x8x32xf32>
    %56 = arith.truncf %55 : vector<2x8x32xf32> to vector<2x8x32xbf16>
    "tpu.trace_start"() <{level = 10 : i32, message = "bqd,bkd->bqk"}> : () -> ()
    %cst_17 = arith.constant dense<0.000000e+00> : vector<2x8x8xf32>
    %57 = tpu.matmul %50, %53, %cst_17 {dimension_numbers = #tpu.dot_dimension_numbers<[2], [2], [1], [1], [0, 0, 0, 1, 1, 1], [0], [0]>} : vector<2x8x32xbf16>, vector<2x8x32xbf16>, vector<2x8x8xf32> -> vector<2x8x8xf32>
    "tpu.trace_stop"() : () -> ()
    %58 = vector.broadcast %22 : vector<2x1x8xf32> to vector<2x8x8xf32>
    %59 = arith.addf %57, %58 : vector<2x8x8xf32>
    %cst_18 = arith.constant dense<0xFF800000> : vector<2x8xf32>
    %60 = vector.multi_reduction <maximumf>, %59, %cst_18 [2] : vector<2x8x8xf32> to vector<2x8xf32>
    %61 = vector.shape_cast %60 : vector<2x8xf32> to vector<2x8x1xf32>
    %62 = vector.broadcast %61 : vector<2x8x1xf32> to vector<2x8x8xf32>
    %63 = arith.subf %59, %62 : vector<2x8x8xf32>
    %64 = math.exp %63 : vector<2x8x8xf32>
    %cst_19 = arith.constant dense<0.000000e+00> : vector<2x8xf32>
    %65 = vector.multi_reduction <add>, %64, %cst_19 [2] : vector<2x8x8xf32> to vector<2x8xf32>
    %66 = vector.shape_cast %65 : vector<2x8xf32> to vector<2x8x1xf32>
    %67 = tpu.reciprocal %66 {approx = true} : vector<2x8x1xf32> -> vector<2x8x1xf32>
    %68 = vector.broadcast %67 : vector<2x8x1xf32> to vector<2x8x8xf32>
    %69 = arith.mulf %64, %68 : vector<2x8x8xf32>
    %70 = arith.truncf %69 : vector<2x8x8xf32> to vector<2x8x8xbf16>
    "tpu.trace_start"() <{level = 10 : i32, message = "bqk,bkd->bqd"}> : () -> ()
    %cst_20 = arith.constant dense<0.000000e+00> : vector<2x8x32xf32>
    %71 = tpu.matmul %70, %56, %cst_20 {dimension_numbers = #tpu.dot_dimension_numbers<[2], [1], [1], [2], [0, 0, 0, 1, 1, 2], [0], [0]>} : vector<2x8x8xbf16>, vector<2x8x32xbf16>, vector<2x8x32xf32> -> vector<2x8x32xf32>
    "tpu.trace_stop"() : () -> ()
    %72 = vector.shape_cast %71 : vector<2x8x32xf32> to vector<16x32xf32>
    %73 = vector.extract_strided_slice %14 {offsets = [0, 64], sizes = [16, 32], strides = [1, 1]} : vector<16x128xf32> to vector<16x32xf32>
    %74 = vector.shape_cast %73 : vector<16x32xf32> to vector<2x8x32xf32>
    %75 = arith.truncf %74 : vector<2x8x32xf32> to vector<2x8x32xbf16>
    %76 = vector.extract_strided_slice %15 {offsets = [0, 64], sizes = [16, 32], strides = [1, 1]} : vector<16x128xf32> to vector<16x32xf32>
    %77 = vector.shape_cast %76 : vector<16x32xf32> to vector<2x8x32xf32>
    %78 = arith.truncf %77 : vector<2x8x32xf32> to vector<2x8x32xbf16>
    %79 = vector.extract_strided_slice %16 {offsets = [0, 64], sizes = [16, 32], strides = [1, 1]} : vector<16x128xf32> to vector<16x32xf32>
    %80 = vector.shape_cast %79 : vector<16x32xf32> to vector<2x8x32xf32>
    %81 = arith.truncf %80 : vector<2x8x32xf32> to vector<2x8x32xbf16>
    "tpu.trace_start"() <{level = 10 : i32, message = "bqd,bkd->bqk"}> : () -> ()
    %cst_21 = arith.constant dense<0.000000e+00> : vector<2x8x8xf32>
    %82 = tpu.matmul %75, %78, %cst_21 {dimension_numbers = #tpu.dot_dimension_numbers<[2], [2], [1], [1], [0, 0, 0, 1, 1, 1], [0], [0]>} : vector<2x8x32xbf16>, vector<2x8x32xbf16>, vector<2x8x8xf32> -> vector<2x8x8xf32>
    "tpu.trace_stop"() : () -> ()
    %83 = vector.broadcast %22 : vector<2x1x8xf32> to vector<2x8x8xf32>
    %84 = arith.addf %82, %83 : vector<2x8x8xf32>
    %cst_22 = arith.constant dense<0xFF800000> : vector<2x8xf32>
    %85 = vector.multi_reduction <maximumf>, %84, %cst_22 [2] : vector<2x8x8xf32> to vector<2x8xf32>
    %86 = vector.shape_cast %85 : vector<2x8xf32> to vector<2x8x1xf32>
    %87 = vector.broadcast %86 : vector<2x8x1xf32> to vector<2x8x8xf32>
    %88 = arith.subf %84, %87 : vector<2x8x8xf32>
    %89 = math.exp %88 : vector<2x8x8xf32>
    %cst_23 = arith.constant dense<0.000000e+00> : vector<2x8xf32>
    %90 = vector.multi_reduction <add>, %89, %cst_23 [2] : vector<2x8x8xf32> to vector<2x8xf32>
    %91 = vector.shape_cast %90 : vector<2x8xf32> to vector<2x8x1xf32>
    %92 = tpu.reciprocal %91 {approx = true} : vector<2x8x1xf32> -> vector<2x8x1xf32>
    %93 = vector.broadcast %92 : vector<2x8x1xf32> to vector<2x8x8xf32>
    %94 = arith.mulf %89, %93 : vector<2x8x8xf32>
    %95 = arith.truncf %94 : vector<2x8x8xf32> to vector<2x8x8xbf16>
    "tpu.trace_start"() <{level = 10 : i32, message = "bqk,bkd->bqd"}> : () -> ()
    %cst_24 = arith.constant dense<0.000000e+00> : vector<2x8x32xf32>
    %96 = tpu.matmul %95, %81, %cst_24 {dimension_numbers = #tpu.dot_dimension_numbers<[2], [1], [1], [2], [0, 0, 0, 1, 1, 2], [0], [0]>} : vector<2x8x8xbf16>, vector<2x8x32xbf16>, vector<2x8x32xf32> -> vector<2x8x32xf32>
    "tpu.trace_stop"() : () -> ()
    %97 = vector.shape_cast %96 : vector<2x8x32xf32> to vector<16x32xf32>
    %98 = vector.extract_strided_slice %14 {offsets = [0, 96], sizes = [16, 32], strides = [1, 1]} : vector<16x128xf32> to vector<16x32xf32>
    %99 = vector.shape_cast %98 : vector<16x32xf32> to vector<2x8x32xf32>
    %100 = arith.truncf %99 : vector<2x8x32xf32> to vector<2x8x32xbf16>
    %101 = vector.extract_strided_slice %15 {offsets = [0, 96], sizes = [16, 32], strides = [1, 1]} : vector<16x128xf32> to vector<16x32xf32>
    %102 = vector.shape_cast %101 : vector<16x32xf32> to vector<2x8x32xf32>
    %103 = arith.truncf %102 : vector<2x8x32xf32> to vector<2x8x32xbf16>
    %104 = vector.extract_strided_slice %16 {offsets = [0, 96], sizes = [16, 32], strides = [1, 1]} : vector<16x128xf32> to vector<16x32xf32>
    %105 = vector.shape_cast %104 : vector<16x32xf32> to vector<2x8x32xf32>
    %106 = arith.truncf %105 : vector<2x8x32xf32> to vector<2x8x32xbf16>
    "tpu.trace_start"() <{level = 10 : i32, message = "bqd,bkd->bqk"}> : () -> ()
    %cst_25 = arith.constant dense<0.000000e+00> : vector<2x8x8xf32>
    %107 = tpu.matmul %100, %103, %cst_25 {dimension_numbers = #tpu.dot_dimension_numbers<[2], [2], [1], [1], [0, 0, 0, 1, 1, 1], [0], [0]>} : vector<2x8x32xbf16>, vector<2x8x32xbf16>, vector<2x8x8xf32> -> vector<2x8x8xf32>
    "tpu.trace_stop"() : () -> ()
    %108 = vector.broadcast %22 : vector<2x1x8xf32> to vector<2x8x8xf32>
    %109 = arith.addf %107, %108 : vector<2x8x8xf32>
    %cst_26 = arith.constant dense<0xFF800000> : vector<2x8xf32>
    %110 = vector.multi_reduction <maximumf>, %109, %cst_26 [2] : vector<2x8x8xf32> to vector<2x8xf32>
    %111 = vector.shape_cast %110 : vector<2x8xf32> to vector<2x8x1xf32>
    %112 = vector.broadcast %111 : vector<2x8x1xf32> to vector<2x8x8xf32>
    %113 = arith.subf %109, %112 : vector<2x8x8xf32>
    %114 = math.exp %113 : vector<2x8x8xf32>
    %cst_27 = arith.constant dense<0.000000e+00> : vector<2x8xf32>
    %115 = vector.multi_reduction <add>, %114, %cst_27 [2] : vector<2x8x8xf32> to vector<2x8xf32>
    %116 = vector.shape_cast %115 : vector<2x8xf32> to vector<2x8x1xf32>
    %117 = tpu.reciprocal %116 {approx = true} : vector<2x8x1xf32> -> vector<2x8x1xf32>
    %118 = vector.broadcast %117 : vector<2x8x1xf32> to vector<2x8x8xf32>
    %119 = arith.mulf %114, %118 : vector<2x8x8xf32>
    %120 = arith.truncf %119 : vector<2x8x8xf32> to vector<2x8x8xbf16>
    "tpu.trace_start"() <{level = 10 : i32, message = "bqk,bkd->bqd"}> : () -> ()
    %cst_28 = arith.constant dense<0.000000e+00> : vector<2x8x32xf32>
    %121 = tpu.matmul %120, %106, %cst_28 {dimension_numbers = #tpu.dot_dimension_numbers<[2], [1], [1], [2], [0, 0, 0, 1, 1, 2], [0], [0]>} : vector<2x8x8xbf16>, vector<2x8x32xbf16>, vector<2x8x32xf32> -> vector<2x8x32xf32>
    "tpu.trace_stop"() : () -> ()
    %122 = vector.shape_cast %121 : vector<2x8x32xf32> to vector<16x32xf32>
    %123 = tpu.concatenate %47, %72, %97, %122 in 1 : vector<16x32xf32>, vector<16x32xf32>, vector<16x32xf32>, vector<16x32xf32> -> vector<16x128xf32>
    %124 = arith.truncf %123 : vector<16x128xf32> to vector<16x128xbf16>
    %c0_29 = arith.constant 0 : index
    %c0_30 = arith.constant 0 : index
    %c0_31 = arith.constant 0 : index
    %125 = vector.load %arg7[%c0_29, %c0_30, %c0_31] : memref<1x128x128xbf16, #tpu.memory_space<vmem>>, vector<1x128x128xbf16>
    %126 = vector.shape_cast %125 : vector<1x128x128xbf16> to vector<128x128xbf16>
    %cst_32 = arith.constant dense<0.000000e+00> : vector<16x128xf32>
    %127 = tpu.matmul %124, %126, %cst_32 {dimension_numbers = #tpu.dot_dimension_numbers<[1], [0], [0], [1], [0, 0, 1, 1], [], []>} : vector<16x128xbf16>, vector<128x128xbf16>, vector<16x128xf32> -> vector<16x128xf32>
    %c0_33 = arith.constant 0 : index
    %c0_34 = arith.constant 0 : index
    %c0_35 = arith.constant 0 : index
    %128 = vector.load %arg8[%c0_33, %c0_34, %c0_35] : memref<1x1x128xf32, #tpu.memory_space<vmem>>, vector<1x1x128xf32>
    %129 = vector.shape_cast %128 : vector<1x1x128xf32> to vector<1x128xf32>
    %130 = vector.broadcast %129 : vector<1x128xf32> to vector<16x128xf32>
    %131 = arith.addf %127, %130 : vector<16x128xf32>
    %132 = arith.addf %131, %3 : vector<16x128xf32>
    %c0_36 = arith.constant 0 : index
    %c0_37 = arith.constant 0 : index
    %c0_38 = arith.constant 0 : index
    %133 = vector.load %arg9[%c0_36, %c0_37, %c0_38] : memref<1x1x128xf32, #tpu.memory_space<vmem>>, vector<1x1x128xf32>
    %134 = vector.shape_cast %133 : vector<1x1x128xf32> to vector<1x128xf32>
    %c0_39 = arith.constant 0 : index
    %c0_40 = arith.constant 0 : index
    %c0_41 = arith.constant 0 : index
    %135 = vector.load %arg10[%c0_39, %c0_40, %c0_41] : memref<1x1x128xf32, #tpu.memory_space<vmem>>, vector<1x1x128xf32>
    %136 = vector.shape_cast %135 : vector<1x1x128xf32> to vector<1x128xf32>
    %cst_42 = arith.constant dense<0.000000e+00> : vector<16xf32>
    %137 = vector.multi_reduction <add>, %132, %cst_42 [1] : vector<16x128xf32> to vector<16xf32>
    %138 = vector.shape_cast %137 : vector<16xf32> to vector<16x1xf32>
    %cst_43 = arith.constant 1.280000e+02 : f32
    %139 = vector.broadcast %cst_43 : f32 to vector<16x1xf32>
    %140 = arith.divf %138, %139 : vector<16x1xf32>
    %141 = vector.broadcast %140 : vector<16x1xf32> to vector<16x128xf32>
    %142 = arith.subf %132, %141 : vector<16x128xf32>
    %143 = arith.mulf %142, %142 : vector<16x128xf32>
    %cst_44 = arith.constant dense<0.000000e+00> : vector<16xf32>
    %144 = vector.multi_reduction <add>, %143, %cst_44 [1] : vector<16x128xf32> to vector<16xf32>
    %145 = vector.shape_cast %144 : vector<16xf32> to vector<16x1xf32>
    %cst_45 = arith.constant 1.280000e+02 : f32
    %146 = vector.broadcast %cst_45 : f32 to vector<16x1xf32>
    %147 = arith.divf %145, %146 : vector<16x1xf32>
    %cst_46 = arith.constant 9.99999996E-13 : f32
    %148 = vector.broadcast %cst_46 : f32 to vector<16x1xf32>
    %149 = arith.addf %147, %148 : vector<16x1xf32>
    %150 = math.rsqrt %149 : vector<16x1xf32>
    %151 = vector.broadcast %150 : vector<16x1xf32> to vector<16x128xf32>
    %152 = arith.mulf %142, %151 : vector<16x128xf32>
    %153 = vector.broadcast %134 : vector<1x128xf32> to vector<16x128xf32>
    %154 = arith.mulf %152, %153 : vector<16x128xf32>
    %155 = vector.broadcast %136 : vector<1x128xf32> to vector<16x128xf32>
    %156 = arith.addf %154, %155 : vector<16x128xf32>
    %157 = arith.truncf %156 : vector<16x128xf32> to vector<16x128xbf16>
    %c0_47 = arith.constant 0 : index
    %c0_48 = arith.constant 0 : index
    %c0_49 = arith.constant 0 : index
    %158 = vector.load %arg11[%c0_47, %c0_48, %c0_49] : memref<1x128x256xbf16, #tpu.memory_space<vmem>>, vector<1x128x256xbf16>
    %159 = vector.shape_cast %158 : vector<1x128x256xbf16> to vector<128x256xbf16>
    %cst_50 = arith.constant dense<0.000000e+00> : vector<16x256xf32>
    %160 = tpu.matmul %157, %159, %cst_50 {dimension_numbers = #tpu.dot_dimension_numbers<[1], [0], [0], [1], [0, 0, 1, 1], [], []>} : vector<16x128xbf16>, vector<128x256xbf16>, vector<16x256xf32> -> vector<16x256xf32>
    %c0_51 = arith.constant 0 : index
    %c0_52 = arith.constant 0 : index
    %c0_53 = arith.constant 0 : index
    %161 = vector.load %arg12[%c0_51, %c0_52, %c0_53] : memref<1x1x256xf32, #tpu.memory_space<vmem>>, vector<1x1x256xf32>
    %162 = vector.shape_cast %161 : vector<1x1x256xf32> to vector<1x256xf32>
    %163 = vector.broadcast %162 : vector<1x256xf32> to vector<16x256xf32>
    %164 = arith.addf %160, %163 : vector<16x256xf32>
    %cst_54 = arith.constant 5.000000e-01 : f32
    %165 = vector.broadcast %cst_54 : f32 to vector<16x256xf32>
    %166 = arith.mulf %165, %164 : vector<16x256xf32>
    %cst_55 = arith.constant 4.471500e-02 : f32
    %167 = vector.broadcast %cst_55 : f32 to vector<16x256xf32>
    %168 = arith.mulf %167, %164 : vector<16x256xf32>
    %169 = arith.mulf %168, %164 : vector<16x256xf32>
    %170 = arith.mulf %169, %164 : vector<16x256xf32>
    %171 = arith.addf %164, %170 : vector<16x256xf32>
    %cst_56 = arith.constant 0.797884583 : f32
    %172 = vector.broadcast %cst_56 : f32 to vector<16x256xf32>
    %173 = arith.mulf %172, %171 : vector<16x256xf32>
    %174 = math.tanh %173 : vector<16x256xf32>
    %cst_57 = arith.constant 1.000000e+00 : f32
    %175 = vector.broadcast %cst_57 : f32 to vector<16x256xf32>
    %176 = arith.addf %175, %174 : vector<16x256xf32>
    %177 = arith.mulf %166, %176 : vector<16x256xf32>
    %178 = arith.truncf %177 : vector<16x256xf32> to vector<16x256xbf16>
    %c0_58 = arith.constant 0 : index
    %c0_59 = arith.constant 0 : index
    %c0_60 = arith.constant 0 : index
    %179 = vector.load %arg13[%c0_58, %c0_59, %c0_60] : memref<1x256x128xbf16, #tpu.memory_space<vmem>>, vector<1x256x128xbf16>
    %180 = vector.shape_cast %179 : vector<1x256x128xbf16> to vector<256x128xbf16>
    %cst_61 = arith.constant dense<0.000000e+00> : vector<16x128xf32>
    %181 = tpu.matmul %178, %180, %cst_61 {dimension_numbers = #tpu.dot_dimension_numbers<[1], [0], [0], [1], [0, 0, 1, 1], [], []>} : vector<16x256xbf16>, vector<256x128xbf16>, vector<16x128xf32> -> vector<16x128xf32>
    %c0_62 = arith.constant 0 : index
    %c0_63 = arith.constant 0 : index
    %c0_64 = arith.constant 0 : index
    %182 = vector.load %arg14[%c0_62, %c0_63, %c0_64] : memref<1x1x128xf32, #tpu.memory_space<vmem>>, vector<1x1x128xf32>
    %183 = vector.shape_cast %182 : vector<1x1x128xf32> to vector<1x128xf32>
    %184 = vector.broadcast %183 : vector<1x128xf32> to vector<16x128xf32>
    %185 = arith.addf %181, %184 : vector<16x128xf32>
    %186 = arith.addf %185, %156 : vector<16x128xf32>
    %c0_65 = arith.constant 0 : index
    %c0_66 = arith.constant 0 : index
    %c0_67 = arith.constant 0 : index
    %187 = vector.load %arg15[%c0_65, %c0_66, %c0_67] : memref<1x1x128xf32, #tpu.memory_space<vmem>>, vector<1x1x128xf32>
    %188 = vector.shape_cast %187 : vector<1x1x128xf32> to vector<1x128xf32>
    %c0_68 = arith.constant 0 : index
    %c0_69 = arith.constant 0 : index
    %c0_70 = arith.constant 0 : index
    %189 = vector.load %arg16[%c0_68, %c0_69, %c0_70] : memref<1x1x128xf32, #tpu.memory_space<vmem>>, vector<1x1x128xf32>
    %190 = vector.shape_cast %189 : vector<1x1x128xf32> to vector<1x128xf32>
    %cst_71 = arith.constant dense<0.000000e+00> : vector<16xf32>
    %191 = vector.multi_reduction <add>, %186, %cst_71 [1] : vector<16x128xf32> to vector<16xf32>
    %192 = vector.shape_cast %191 : vector<16xf32> to vector<16x1xf32>
    %cst_72 = arith.constant 1.280000e+02 : f32
    %193 = vector.broadcast %cst_72 : f32 to vector<16x1xf32>
    %194 = arith.divf %192, %193 : vector<16x1xf32>
    %195 = vector.broadcast %194 : vector<16x1xf32> to vector<16x128xf32>
    %196 = arith.subf %186, %195 : vector<16x128xf32>
    %197 = arith.mulf %196, %196 : vector<16x128xf32>
    %cst_73 = arith.constant dense<0.000000e+00> : vector<16xf32>
    %198 = vector.multi_reduction <add>, %197, %cst_73 [1] : vector<16x128xf32> to vector<16xf32>
    %199 = vector.shape_cast %198 : vector<16xf32> to vector<16x1xf32>
    %cst_74 = arith.constant 1.280000e+02 : f32
    %200 = vector.broadcast %cst_74 : f32 to vector<16x1xf32>
    %201 = arith.divf %199, %200 : vector<16x1xf32>
    %cst_75 = arith.constant 9.99999996E-13 : f32
    %202 = vector.broadcast %cst_75 : f32 to vector<16x1xf32>
    %203 = arith.addf %201, %202 : vector<16x1xf32>
    %204 = math.rsqrt %203 : vector<16x1xf32>
    %205 = vector.broadcast %204 : vector<16x1xf32> to vector<16x128xf32>
    %206 = arith.mulf %196, %205 : vector<16x128xf32>
    %207 = vector.broadcast %188 : vector<1x128xf32> to vector<16x128xf32>
    %208 = arith.mulf %206, %207 : vector<16x128xf32>
    %209 = vector.broadcast %190 : vector<1x128xf32> to vector<16x128xf32>
    %210 = arith.addf %208, %209 : vector<16x128xf32>
    %c0_76 = arith.constant 0 : index
    %c0_77 = arith.constant 0 : index
    %211 = vector.load %arg22[%c0_76, %c0_77] : memref<16x128xf32, #tpu.memory_space<vmem>>, vector<16x128xf32>
    tpu.vector_store %arg22[%c0_76, %c0_77], %210 {strides = array<i32>} : memref<16x128xf32, #tpu.memory_space<vmem>>, vector<16x128xf32>,
    %c1_i32 = arith.constant 1 : i32
    %212 = arith.cmpi eq, %arg0, %c1_i32 : i32
    %213 = arith.extui %212 : i1 to i32
    %c0_i32_78 = arith.constant 0 : i32
    %214 = arith.cmpi ne, %213, %c0_i32_78 : i32
    scf.if %214 {
      %215 = vector.shape_cast %210 : vector<16x128xf32> to vector<2x8x128xf32>
      %216 = vector.extract_strided_slice %215 {offsets = [0, 0, 0], sizes = [2, 1, 128], strides = [1, 1, 1]} : vector<2x8x128xf32> to vector<2x1x128xf32>
      %217 = vector.shape_cast %216 : vector<2x1x128xf32> to vector<2x128xf32>
      %218 = arith.truncf %217 : vector<2x128xf32> to vector<2x128xbf16>
      %c0_79 = arith.constant 0 : index
      %c0_80 = arith.constant 0 : index
      %219 = vector.load %arg17[%c0_79, %c0_80] : memref<128x128xbf16, #tpu.memory_space<vmem>>, vector<128x128xbf16>
      %cst_81 = arith.constant dense<0.000000e+00> : vector<2x128xf32>
      %220 = tpu.matmul %218, %219, %cst_81 {dimension_numbers = #tpu.dot_dimension_numbers<[1], [0], [0], [1], [0, 0, 1, 1], [], []>} : vector<2x128xbf16>, vector<128x128xbf16>, vector<2x128xf32> -> vector<2x128xf32>
      %c0_82 = arith.constant 0 : index
      %c0_83 = arith.constant 0 : index
      %221 = vector.load %arg18[%c0_82, %c0_83] : memref<1x128xf32, #tpu.memory_space<vmem>>, vector<1x128xf32>
      %222 = vector.broadcast %221 : vector<1x128xf32> to vector<2x128xf32>
      %223 = arith.addf %220, %222 : vector<2x128xf32>
      %224 = math.tanh %223 : vector<2x128xf32>
      %225 = arith.truncf %224 : vector<2x128xf32> to vector<2x128xbf16>
      %c0_84 = arith.constant 0 : index
      %c0_85 = arith.constant 0 : index
      %226 = vector.load %arg19[%c0_84, %c0_85] : memref<128x128xbf16, #tpu.memory_space<vmem>>, vector<128x128xbf16>
      %cst_86 = arith.constant dense<0.000000e+00> : vector<2x128xf32>
      %227 = tpu.matmul %225, %226, %cst_86 {dimension_numbers = #tpu.dot_dimension_numbers<[1], [0], [0], [1], [0, 0, 1, 1], [], []>} : vector<2x128xbf16>, vector<128x128xbf16>, vector<2x128xf32> -> vector<2x128xf32>
      %c0_87 = arith.constant 0 : index
      %c0_88 = arith.constant 0 : index
      %228 = vector.load %arg20[%c0_87, %c0_88] : memref<1x128xf32, #tpu.memory_space<vmem>>, vector<1x128xf32>
      %229 = vector.broadcast %228 : vector<1x128xf32> to vector<2x128xf32>
      %230 = arith.addf %227, %229 : vector<2x128xf32>
      %cst_89 = arith.constant 0.000000e+00 : f32
      %231 = vector.broadcast %cst_89 : f32 to vector<2x128xf32>
      %232 = arith.maximumf %230, %231 : vector<2x128xf32>
      %c0_90 = arith.constant 0 : index
      %c0_91 = arith.constant 0 : index
      %233 = vector.load %arg21[%c0_90, %c0_91] : memref<2x128xf32, #tpu.memory_space<vmem>>, vector<2x128xf32>
      tpu.vector_store %arg21[%c0_90, %c0_91], %232 {strides = array<i32>} : memref<2x128xf32, #tpu.memory_space<vmem>>, vector<2x128xf32>,
    } else {
    }
    return
  }
  func.func @transform_0(%arg0: i32) -> (i32, i32) {
    %c0_i32 = arith.constant 0 : i32
    %c0_i32_0 = arith.constant 0 : i32
    %c0_i32_1 = arith.constant 0 : i32
    return %c0_i32, %c0_i32_0 : i32, i32
  }
  func.func @transform_1(%arg0: i32) -> (i32, i32) {
    %c0_i32 = arith.constant 0 : i32
    %c0_i32_0 = arith.constant 0 : i32
    %c0_i32_1 = arith.constant 0 : i32
    return %c0_i32, %c0_i32_0 : i32, i32
  }
  func.func @transform_2(%arg0: i32) -> (i32, i32) {
    %c0_i32 = arith.constant 0 : i32
    %c0_i32_0 = arith.constant 0 : i32
    %c0_i32_1 = arith.constant 0 : i32
    return %c0_i32, %c0_i32_0 : i32, i32
  }
  func.func @transform_3(%arg0: i32) -> (i32, i32) {
    %c0_i32 = arith.constant 0 : i32
    %c0_i32_0 = arith.constant 0 : i32
    %c0_i32_1 = arith.constant 0 : i32
    return %c0_i32, %c0_i32_0 : i32, i32
  }
  func.func @transform_4(%arg0: i32) -> (i32, i32, i32) {
    %c0_i32 = arith.constant 0 : i32
    %c0_i32_0 = arith.constant 0 : i32
    %c0_i32_1 = arith.constant 0 : i32
    return %arg0, %c0_i32, %c0_i32_0 : i32, i32, i32
  }
  func.func @transform_5(%arg0: i32) -> (i32, i32, i32) {
    %c0_i32 = arith.constant 0 : i32
    %c0_i32_0 = arith.constant 0 : i32
    %c0_i32_1 = arith.constant 0 : i32
    return %arg0, %c0_i32, %c0_i32_0 : i32, i32, i32
  }
  func.func @transform_6(%arg0: i32) -> (i32, i32, i32) {
    %c0_i32 = arith.constant 0 : i32
    %c0_i32_0 = arith.constant 0 : i32
    %c0_i32_1 = arith.constant 0 : i32
    return %arg0, %c0_i32, %c0_i32_0 : i32, i32, i32
  }
  func.func @transform_7(%arg0: i32) -> (i32, i32, i32) {
    %c0_i32 = arith.constant 0 : i32
    %c0_i32_0 = arith.constant 0 : i32
    %c0_i32_1 = arith.constant 0 : i32
    return %arg0, %c0_i32, %c0_i32_0 : i32, i32, i32
  }
  func.func @transform_8(%arg0: i32) -> (i32, i32, i32) {
    %c0_i32 = arith.constant 0 : i32
    %c0_i32_0 = arith.constant 0 : i32
    %c0_i32_1 = arith.constant 0 : i32
    return %arg0, %c0_i32, %c0_i32_0 : i32, i32, i32
  }
  func.func @transform_9(%arg0: i32) -> (i32, i32, i32) {
    %c0_i32 = arith.constant 0 : i32
    %c0_i32_0 = arith.constant 0 : i32
    %c0_i32_1 = arith.constant 0 : i32
    return %arg0, %c0_i32, %c0_i32_0 : i32, i32, i32
  }
  func.func @transform_10(%arg0: i32) -> (i32, i32, i32) {
    %c0_i32 = arith.constant 0 : i32
    %c0_i32_0 = arith.constant 0 : i32
    %c0_i32_1 = arith.constant 0 : i32
    return %arg0, %c0_i32, %c0_i32_0 : i32, i32, i32
  }
  func.func @transform_11(%arg0: i32) -> (i32, i32, i32) {
    %c0_i32 = arith.constant 0 : i32
    %c0_i32_0 = arith.constant 0 : i32
    %c0_i32_1 = arith.constant 0 : i32
    return %arg0, %c0_i32, %c0_i32_0 : i32, i32, i32
  }
  func.func @transform_12(%arg0: i32) -> (i32, i32, i32) {
    %c0_i32 = arith.constant 0 : i32
    %c0_i32_0 = arith.constant 0 : i32
    %c0_i32_1 = arith.constant 0 : i32
    return %arg0, %c0_i32, %c0_i32_0 : i32, i32, i32
  }
  func.func @transform_13(%arg0: i32) -> (i32, i32, i32) {
    %c0_i32 = arith.constant 0 : i32
    %c0_i32_0 = arith.constant 0 : i32
    %c0_i32_1 = arith.constant 0 : i32
    return %arg0, %c0_i32, %c0_i32_0 : i32, i32, i32
  }
  func.func @transform_14(%arg0: i32) -> (i32, i32, i32) {
    %c0_i32 = arith.constant 0 : i32
    %c0_i32_0 = arith.constant 0 : i32
    %c0_i32_1 = arith.constant 0 : i32
    return %arg0, %c0_i32, %c0_i32_0 : i32, i32, i32
  }
  func.func @transform_15(%arg0: i32) -> (i32, i32, i32) {
    %c0_i32 = arith.constant 0 : i32
    %c0_i32_0 = arith.constant 0 : i32
    %c0_i32_1 = arith.constant 0 : i32
    return %arg0, %c0_i32, %c0_i32_0 : i32, i32, i32
  }
  func.func @transform_16(%arg0: i32) -> (i32, i32) {
    %c0_i32 = arith.constant 0 : i32
    %c0_i32_0 = arith.constant 0 : i32
    %c0_i32_1 = arith.constant 0 : i32
    return %c0_i32, %c0_i32_0 : i32, i32
  }
  func.func @transform_17(%arg0: i32) -> (i32, i32) {
    %c0_i32 = arith.constant 0 : i32
    %c0_i32_0 = arith.constant 0 : i32
    %c0_i32_1 = arith.constant 0 : i32
    return %c0_i32, %c0_i32_0 : i32, i32
  }
  func.func @transform_18(%arg0: i32) -> (i32, i32) {
    %c0_i32 = arith.constant 0 : i32
    %c0_i32_0 = arith.constant 0 : i32
    %c0_i32_1 = arith.constant 0 : i32
    return %c0_i32, %c0_i32_0 : i32, i32
  }
  func.func @transform_19(%arg0: i32) -> (i32, i32) {
    %c0_i32 = arith.constant 0 : i32
    %c0_i32_0 = arith.constant 0 : i32
    %c0_i32_1 = arith.constant 0 : i32
    return %c0_i32, %c0_i32_0 : i32, i32
  }
  func.func @transform_20(%arg0: i32) -> (i32, i32) {
    %c0_i32 = arith.constant 0 : i32
    %c0_i32_0 = arith.constant 0 : i32
    %c0_i32_1 = arith.constant 0 : i32
    return %c0_i32, %c0_i32_0 : i32, i32
  }
}

</mosaic_0001>

<llo_original>
// kernel: bert_classifier_forward.1
$region0: #{bert_classifier_forward.1}
  #allocation0 [shape = 'u32[]', space=smem, size = 0x4, offset = 0x4, fixed_abs, tag = 'smem constant byte address 0x4 - core index']
  #allocation1 [shape = 'u32[72,128]{1,0:T(1,128)}', space=vmem, size = 0x9000, scoped, tag = 'internal scratch']
  #allocation2 [shape = 'f32[16,128]{1,0:T(8,128)}', space=vmem, size = 0x2000, scoped, tag = 'scratch operand']
  %s0 = inlined_call_operand.vmem [shape: f32[2,8], index: 0, kind: input, shape index: {}]
  %s1 = inlined_call_operand.vmem [shape: f32[16,128], index: 1, kind: input, shape index: {}]
  %s2 = inlined_call_operand.vmem [shape: f32[1,128], index: 2, kind: input, shape index: {}]
  %s3 = inlined_call_operand.vmem [shape: f32[1,128], index: 3, kind: input, shape index: {}]
  %s4 = inlined_call_operand.hbm [shape: bf16[2,128,384], index: 4, kind: input, shape index: {}]
  %s5 = inlined_call_operand.vmem [shape: f32[2,1,384], index: 5, kind: input, shape index: {}]
  %s6 = inlined_call_operand.vmem [shape: bf16[2,128,128], index: 6, kind: input, shape index: {}]
  %s7 = inlined_call_operand.vmem [shape: f32[2,1,128], index: 7, kind: input, shape index: {}]
  %s8 = inlined_call_operand.vmem [shape: f32[2,1,128], index: 8, kind: input, shape index: {}]
  %s9 = inlined_call_operand.vmem [shape: f32[2,1,128], index: 9, kind: input, shape index: {}]
  %s10 = inlined_call_operand.hbm [shape: bf16[2,128,256], index: 10, kind: input, shape index: {}]
  %s11 = inlined_call_operand.vmem [shape: f32[2,1,256], index: 11, kind: input, shape index: {}]
  %s12 = inlined_call_operand.hbm [shape: bf16[2,256,128], index: 12, kind: input, shape index: {}]
  %s13 = inlined_call_operand.vmem [shape: f32[2,1,128], index: 13, kind: input, shape index: {}]
  %s14 = inlined_call_operand.vmem [shape: f32[2,1,128], index: 14, kind: input, shape index: {}]
  %s15 = inlined_call_operand.vmem [shape: f32[2,1,128], index: 15, kind: input, shape index: {}]
  %s16 = inlined_call_operand.vmem [shape: bf16[128,128], index: 16, kind: input, shape index: {}]
  %s17 = inlined_call_operand.vmem [shape: f32[1,128], index: 17, kind: input, shape index: {}]
  %s18 = inlined_call_operand.hbm [shape: bf16[128,128], index: 18, kind: input, shape index: {}]
  %s19 = inlined_call_operand.vmem [shape: f32[1,128], index: 19, kind: input, shape index: {}]
  %s20 = inlined_call_operand.hbm [shape: f32[2,128], index: 20, kind: output, shape index: {}]
  %s21 = sld [smem:[#allocation0]]
  $region137: #{bert_classifier_forward.1} parent=0
    _
  %s23 = ssub.s32 1, %s21
  %s24 = scalar_select 0, %s23, %s21
  $region1: #{bert_classifier_forward.1} parent=0
    #allocation3 [shape = 'u8[196608]{0}', space=vmem, size = 0x30000, scoped, tag = 'input window, operand 4']
    #allocation4 [shape = 's32[2]{0}', space=sflag, size = 0x8, scoped, tag = 'scoped memory for bert_classifier_forward.1']
    #allocation5 [shape = 's32[2]{0}', space=sflag, size = 0x8, scoped, tag = 'scoped memory for bert_classifier_forward.1']
    #allocation6 [shape = 'u8[131072]{0}', space=vmem, size = 0x20000, scoped, tag = 'input window, operand 10']
    #allocation7 [shape = 's32[2]{0}', space=sflag, size = 0x8, scoped, tag = 'scoped memory for bert_classifier_forward.1']
    #allocation8 [shape = 'u8[131072]{0}', space=vmem, size = 0x20000, scoped, tag = 'input window, operand 12']
    #allocation9 [shape = 'u8[32768]{0}', space=vmem, size = 0x8000, scoped, tag = 'input window, operand 18, single buffered']
    #allocation10 [shape = 's32[1]{0}', space=sflag, size = 0x4, scoped, tag = 'scoped memory for bert_classifier_forward.1']
    #allocation11 [shape = 'u8[1024]{0}', space=vmem, size = 0x400, scoped, tag = 'output window, operand 0, single buffered']
    %25 = vsyncpa [#allocation4], 0
    %s26 = scalar_lea.sflag [#allocation4], 1
    %27 = vsyncpa %s26, 0
    %28 = vsyncpa [#allocation7], 0
    %s29 = scalar_lea.sflag [#allocation7], 1
    %30 = vsyncpa %s29, 0
    %31 = vsyncpa [#allocation10], 0
    %32 = vsyncpa [#allocation5], 0
    loop: start=0, step=1, limit=4
    $region2: #{bert_classifier_forward.1} parent=1 // loop_pre_header
      _
    $region3: #{bert_classifier_forward.1} parent=1 // loop_header
      %s34 = sphi 0, %s38
      %p35 = scmp.ge.s32.totalorder %s34, 4
      %s42 = sphi 0, %s42
      %s44 = sphi 0, %s42
      %s45 = sphi 0, %s44
      %s59 = sphi 0, %s45
      %s63 = sphi 0, %s63
      %s65 = sphi 0, %s63
      %s66 = sphi 0, %s65
      %s80 = sphi 0, %s66
      %s84 = sphi 0, %s84
      %s86 = sphi 0, %s84
      %s87 = sphi 0, %s86
      %s101 = sphi 0, %s87
      %s105 = sphi 0, %s105
      %s107 = sphi 0, %s105
      %s108 = sphi 0, %s107
      %s122 = sphi 0, %s108
      %s128 = sphi 0, %s130
      %s131 = sphi 0, %s128
      %s132 = sphi 0, %s131
      %s148 = sphi 0, %s132
      %s154 = sphi 0, %s156
      %s157 = sphi 0, %s154
      %s158 = sphi 0, %s157
      %s174 = sphi 0, %s158
      %s180 = sphi 0, %s182
      %s183 = sphi 0, %s180
      %s184 = sphi 0, %s183
      %s200 = sphi 0, %s184
      %s206 = sphi 0, %s208
      %s209 = sphi 0, %s206
      %s210 = sphi 0, %s209
      %s226 = sphi 0, %s210
      %s232 = sphi 0, %s234
      %s235 = sphi 0, %s232
      %s236 = sphi 0, %s235
      %s252 = sphi 0, %s236
      %s258 = sphi 0, %s260
      %s261 = sphi 0, %s258
      %s262 = sphi 0, %s261
      %s278 = sphi 0, %s262
      %s284 = sphi 0, %s286
      %s287 = sphi 0, %s284
      %s288 = sphi 0, %s287
      %s304 = sphi 0, %s288
      %s310 = sphi 0, %s312
      %s313 = sphi 0, %s310
      %s314 = sphi 0, %s313
      %s330 = sphi 0, %s314
      %s336 = sphi 0, %s338
      %s339 = sphi 0, %s336
      %s340 = sphi 0, %s339
      %s356 = sphi 0, %s340
      %s362 = sphi 0, %s364
      %s365 = sphi 0, %s362
      %s366 = sphi 0, %s365
      %s382 = sphi 0, %s366
      %s388 = sphi 0, %s390
      %s391 = sphi 0, %s388
      %s392 = sphi 0, %s391
      %s408 = sphi 0, %s392
      %s414 = sphi 0, %s416
      %s417 = sphi 0, %s414
      %s418 = sphi 0, %s417
      %s434 = sphi 0, %s418
      %s438 = sphi 0, %s438
      %s440 = sphi 0, %s438
      %s441 = sphi 0, %s440
      %s455 = sphi 0, %s441
      %s459 = sphi 0, %s459
      %s461 = sphi 0, %s459
      %s462 = sphi 0, %s461
      %s476 = sphi 0, %s462
      %s480 = sphi 0, %s480
      %s482 = sphi 0, %s480
      %s483 = sphi 0, %s482
      %s497 = sphi 0, %s483
      %s501 = sphi 0, %s501
      %s503 = sphi 0, %s501
      %s504 = sphi 0, %s503
      %s518 = sphi 0, %s504
      %s522 = sphi 0, %s522
      %s524 = sphi 0, %s522
      %s525 = sphi 0, %s524
      %s539 = sphi 0, %s525
    $region4: #{bert_classifier_forward.1} parent=1 // loop_header_branch
      %37 = sbr.rel (%p35) target = $region8
    $region5: #{bert_classifier_forward.1} parent=1 // loop_body
      %s39 = ssub.s32 %s34, 1
      %s40 = ssub.s32 %s34, 2
      %s41 = sadd.s32 %s34, 1
      %s43 = sadd.s32 %s42, 1
      %p46 = scmp.eq.s32.totalorder %s34, 1
      %p47 = scmp.ne.s32.totalorder %s42, %s44
      %p48 = scmp.eq.s32.totalorder %s34, 0
      %p49 = por %p47, %p48
      %p50 = scmp.ne.s32.totalorder %s42, %s44
      %p51 = scmp.eq.s32.totalorder %s39, 1
      %p52 = por %p50, %p51
      %p53 = scmp.ne.s32.totalorder %s44, %s45
      %p54 = scmp.eq.s32.totalorder %s39, 0
      %p55 = por %p53, %p54
      %p56 = scmp.ne.s32.totalorder %s44, %s45
      %p57 = scmp.eq.s32.totalorder %s40, 1
      %p58 = por %p56, %p57
      %p60 = scmp.ne.s32.totalorder %s45, %s59
      %p61 = scmp.eq.s32.totalorder %s40, 0
      %p62 = por %p60, %p61
      %s64 = sadd.s32 %s63, 1
      %p67 = scmp.eq.s32.totalorder %s34, 1
      %p68 = scmp.ne.s32.totalorder %s63, %s65
      %p69 = scmp.eq.s32.totalorder %s34, 0
      %p70 = por %p68, %p69
      %p71 = scmp.ne.s32.totalorder %s63, %s65
      %p72 = scmp.eq.s32.totalorder %s39, 1
      %p73 = por %p71, %p72
      %p74 = scmp.ne.s32.totalorder %s65, %s66
      %p75 = scmp.eq.s32.totalorder %s39, 0
      %p76 = por %p74, %p75
      %p77 = scmp.ne.s32.totalorder %s65, %s66
      %p78 = scmp.eq.s32.totalorder %s40, 1
      %p79 = por %p77, %p78
      %p81 = scmp.ne.s32.totalorder %s66, %s80
      %p82 = scmp.eq.s32.totalorder %s40, 0
      %p83 = por %p81, %p82
      %s85 = sadd.s32 %s84, 1
      %p88 = scmp.eq.s32.totalorder %s34, 1
      %p89 = scmp.ne.s32.totalorder %s84, %s86
      %p90 = scmp.eq.s32.totalorder %s34, 0
      %p91 = por %p89, %p90
      %p92 = scmp.ne.s32.totalorder %s84, %s86
      %p93 = scmp.eq.s32.totalorder %s39, 1
      %p94 = por %p92, %p93
      %p95 = scmp.ne.s32.totalorder %s86, %s87
      %p96 = scmp.eq.s32.totalorder %s39, 0
      %p97 = por %p95, %p96
      %p98 = scmp.ne.s32.totalorder %s86, %s87
      %p99 = scmp.eq.s32.totalorder %s40, 1
      %p100 = por %p98, %p99
      %p102 = scmp.ne.s32.totalorder %s87, %s101
      %p103 = scmp.eq.s32.totalorder %s40, 0
      %p104 = por %p102, %p103
      %s106 = sadd.s32 %s105, 1
      %p109 = scmp.eq.s32.totalorder %s34, 1
      %p110 = scmp.ne.s32.totalorder %s105, %s107
      %p111 = scmp.eq.s32.totalorder %s34, 0
      %p112 = por %p110, %p111
      %p113 = scmp.ne.s32.totalorder %s105, %s107
      %p114 = scmp.eq.s32.totalorder %s39, 1
      %p115 = por %p113, %p114
      %p116 = scmp.ne.s32.totalorder %s107, %s108
      %p117 = scmp.eq.s32.totalorder %s39, 0
      %p118 = por %p116, %p117
      %p119 = scmp.ne.s32.totalorder %s107, %s108
      %p120 = scmp.eq.s32.totalorder %s40, 1
      %p121 = por %p119, %p120
      %p123 = scmp.ne.s32.totalorder %s108, %s122
      %p124 = scmp.eq.s32.totalorder %s40, 0
      %p125 = por %p123, %p124
      %s126 = ssub.s32 %s34, %s41
      %p127 = scmp.eq.s32.totalorder %s126, 0
      %s129 = sadd.s32 %s128, 1
      %s130 = scalar_select %p127, %s128, %s129
      %p133 = pneg %p127
      %p134 = scmp.eq.s32.totalorder %s34, 1
      %p135 = por %p133, %p134
      %p136 = scmp.ne.s32.totalorder %s128, %s131
      %p137 = scmp.eq.s32.totalorder %s34, 0
      %p138 = por %p136, %p137
      %p139 = scmp.ne.s32.totalorder %s128, %s131
      %p140 = scmp.eq.s32.totalorder %s39, 1
      %p141 = por %p139, %p140
      %p142 = scmp.ne.s32.totalorder %s131, %s132
      %p143 = scmp.eq.s32.totalorder %s39, 0
      %p144 = por %p142, %p143
      %p145 = scmp.ne.s32.totalorder %s131, %s132
      %p146 = scmp.eq.s32.totalorder %s40, 1
      %p147 = por %p145, %p146
      %p149 = scmp.ne.s32.totalorder %s132, %s148
      %p150 = scmp.eq.s32.totalorder %s40, 0
      %p151 = por %p149, %p150
      %s152 = ssub.s32 %s34, %s41
      %p153 = scmp.eq.s32.totalorder %s152, 0
      %s155 = sadd.s32 %s154, 1
      %s156 = scalar_select %p153, %s154, %s155
      %p159 = pneg %p153
      %p160 = scmp.eq.s32.totalorder %s34, 1
      %p161 = por %p159, %p160
      %p162 = scmp.ne.s32.totalorder %s154, %s157
      %p163 = scmp.eq.s32.totalorder %s34, 0
      %p164 = por %p162, %p163
      %p165 = scmp.ne.s32.totalorder %s154, %s157
      %p166 = scmp.eq.s32.totalorder %s39, 1
      %p167 = por %p165, %p166
      %p168 = scmp.ne.s32.totalorder %s157, %s158
      %p169 = scmp.eq.s32.totalorder %s39, 0
      %p170 = por %p168, %p169
      %p171 = scmp.ne.s32.totalorder %s157, %s158
      %p172 = scmp.eq.s32.totalorder %s40, 1
      %p173 = por %p171, %p172
      %p175 = scmp.ne.s32.totalorder %s158, %s174
      %p176 = scmp.eq.s32.totalorder %s40, 0
      %p177 = por %p175, %p176
      %s178 = ssub.s32 %s34, %s41
      %p179 = scmp.eq.s32.totalorder %s178, 0
      %s181 = sadd.s32 %s180, 1
      %s182 = scalar_select %p179, %s180, %s181
      %p185 = pneg %p179
      %p186 = scmp.eq.s32.totalorder %s34, 1
      %p187 = por %p185, %p186
      %p188 = scmp.ne.s32.totalorder %s180, %s183
      %p189 = scmp.eq.s32.totalorder %s34, 0
      %p190 = por %p188, %p189
      %p191 = scmp.ne.s32.totalorder %s180, %s183
      %p192 = scmp.eq.s32.totalorder %s39, 1
      %p193 = por %p191, %p192
      %p194 = scmp.ne.s32.totalorder %s183, %s184
      %p195 = scmp.eq.s32.totalorder %s39, 0
      %p196 = por %p194, %p195
      %p197 = scmp.ne.s32.totalorder %s183, %s184
      %p198 = scmp.eq.s32.totalorder %s40, 1
      %p199 = por %p197, %p198
      %p201 = scmp.ne.s32.totalorder %s184, %s200
      %p202 = scmp.eq.s32.totalorder %s40, 0
      %p203 = por %p201, %p202
      %s204 = ssub.s32 %s34, %s41
      %p205 = scmp.eq.s32.totalorder %s204, 0
      %s207 = sadd.s32 %s206, 1
      %s208 = scalar_select %p205, %s206, %s207
      %p211 = pneg %p205
      %p212 = scmp.eq.s32.totalorder %s34, 1
      %p213 = por %p211, %p212
      %p214 = scmp.ne.s32.totalorder %s206, %s209
      %p215 = scmp.eq.s32.totalorder %s34, 0
      %p216 = por %p214, %p215
      %p217 = scmp.ne.s32.totalorder %s206, %s209
      %p218 = scmp.eq.s32.totalorder %s39, 1
      %p219 = por %p217, %p218
      %p220 = scmp.ne.s32.totalorder %s209, %s210
      %p221 = scmp.eq.s32.totalorder %s39, 0
      %p222 = por %p220, %p221
      %p223 = scmp.ne.s32.totalorder %s209, %s210
      %p224 = scmp.eq.s32.totalorder %s40, 1
      %p225 = por %p223, %p224
      %p227 = scmp.ne.s32.totalorder %s210, %s226
      %p228 = scmp.eq.s32.totalorder %s40, 0
      %p229 = por %p227, %p228
      %s230 = ssub.s32 %s34, %s41
      %p231 = scmp.eq.s32.totalorder %s230, 0
      %s233 = sadd.s32 %s232, 1
      %s234 = scalar_select %p231, %s232, %s233
      %p237 = pneg %p231
      %p238 = scmp.eq.s32.totalorder %s34, 1
      %p239 = por %p237, %p238
      %p240 = scmp.ne.s32.totalorder %s232, %s235
      %p241 = scmp.eq.s32.totalorder %s34, 0
      %p242 = por %p240, %p241
      %p243 = scmp.ne.s32.totalorder %s232, %s235
      %p244 = scmp.eq.s32.totalorder %s39, 1
      %p245 = por %p243, %p244
      %p246 = scmp.ne.s32.totalorder %s235, %s236
      %p247 = scmp.eq.s32.totalorder %s39, 0
      %p248 = por %p246, %p247
      %p249 = scmp.ne.s32.totalorder %s235, %s236
      %p250 = scmp.eq.s32.totalorder %s40, 1
      %p251 = por %p249, %p250
      %p253 = scmp.ne.s32.totalorder %s236, %s252
      %p254 = scmp.eq.s32.totalorder %s40, 0
      %p255 = por %p253, %p254
      %s256 = ssub.s32 %s34, %s41
      %p257 = scmp.eq.s32.totalorder %s256, 0
      %s259 = sadd.s32 %s258, 1
      %s260 = scalar_select %p257, %s258, %s259
      %p263 = pneg %p257
      %p264 = scmp.eq.s32.totalorder %s34, 1
      %p265 = por %p263, %p264
      %p266 = scmp.ne.s32.totalorder %s258, %s261
      %p267 = scmp.eq.s32.totalorder %s34, 0
      %p268 = por %p266, %p267
      %p269 = scmp.ne.s32.totalorder %s258, %s261
      %p270 = scmp.eq.s32.totalorder %s39, 1
      %p271 = por %p269, %p270
      %p272 = scmp.ne.s32.totalorder %s261, %s262
      %p273 = scmp.eq.s32.totalorder %s39, 0
      %p274 = por %p272, %p273
      %p275 = scmp.ne.s32.totalorder %s261, %s262
      %p276 = scmp.eq.s32.totalorder %s40, 1
      %p277 = por %p275, %p276
      %p279 = scmp.ne.s32.totalorder %s262, %s278
      %p280 = scmp.eq.s32.totalorder %s40, 0
      %p281 = por %p279, %p280
      %s282 = ssub.s32 %s34, %s41
      %p283 = scmp.eq.s32.totalorder %s282, 0
      %s285 = sadd.s32 %s284, 1
      %s286 = scalar_select %p283, %s284, %s285
      %p289 = pneg %p283
      %p290 = scmp.eq.s32.totalorder %s34, 1
      %p291 = por %p289, %p290
      %p292 = scmp.ne.s32.totalorder %s284, %s287
      %p293 = scmp.eq.s32.totalorder %s34, 0
      %p294 = por %p292, %p293
      %p295 = scmp.ne.s32.totalorder %s284, %s287
      %p296 = scmp.eq.s32.totalorder %s39, 1
      %p297 = por %p295, %p296
      %p298 = scmp.ne.s32.totalorder %s287, %s288
      %p299 = scmp.eq.s32.totalorder %s39, 0
      %p300 = por %p298, %p299
      %p301 = scmp.ne.s32.totalorder %s287, %s288
      %p302 = scmp.eq.s32.totalorder %s40, 1
      %p303 = por %p301, %p302
      %p305 = scmp.ne.s32.totalorder %s288, %s304
      %p306 = scmp.eq.s32.totalorder %s40, 0
      %p307 = por %p305, %p306
      %s308 = ssub.s32 %s34, %s41
      %p309 = scmp.eq.s32.totalorder %s308, 0
      %s311 = sadd.s32 %s310, 1
      %s312 = scalar_select %p309, %s310, %s311
      %p315 = pneg %p309
      %p316 = scmp.eq.s32.totalorder %s34, 1
      %p317 = por %p315, %p316
      %p318 = scmp.ne.s32.totalorder %s310, %s313
      %p319 = scmp.eq.s32.totalorder %s34, 0
      %p320 = por %p318, %p319
      %p321 = scmp.ne.s32.totalorder %s310, %s313
      %p322 = scmp.eq.s32.totalorder %s39, 1
      %p323 = por %p321, %p322
      %p324 = scmp.ne.s32.totalorder %s313, %s314
      %p325 = scmp.eq.s32.totalorder %s39, 0
      %p326 = por %p324, %p325
      %p327 = scmp.ne.s32.totalorder %s313, %s314
      %p328 = scmp.eq.s32.totalorder %s40, 1
      %p329 = por %p327, %p328
      %p331 = scmp.ne.s32.totalorder %s314, %s330
      %p332 = scmp.eq.s32.totalorder %s40, 0
      %p333 = por %p331, %p332
      %s334 = ssub.s32 %s34, %s41
      %p335 = scmp.eq.s32.totalorder %s334, 0
      %s337 = sadd.s32 %s336, 1
      %s338 = scalar_select %p335, %s336, %s337
      %p341 = pneg %p335
      %p342 = scmp.eq.s32.totalorder %s34, 1
      %p343 = por %p341, %p342
      %p344 = scmp.ne.s32.totalorder %s336, %s339
      %p345 = scmp.eq.s32.totalorder %s34, 0
      %p346 = por %p344, %p345
      %p347 = scmp.ne.s32.totalorder %s336, %s339
      %p348 = scmp.eq.s32.totalorder %s39, 1
      %p349 = por %p347, %p348
      %p350 = scmp.ne.s32.totalorder %s339, %s340
      %p351 = scmp.eq.s32.totalorder %s39, 0
      %p352 = por %p350, %p351
      %p353 = scmp.ne.s32.totalorder %s339, %s340
      %p354 = scmp.eq.s32.totalorder %s40, 1
      %p355 = por %p353, %p354
      %p357 = scmp.ne.s32.totalorder %s340, %s356
      %p358 = scmp.eq.s32.totalorder %s40, 0
      %p359 = por %p357, %p358
      %s360 = ssub.s32 %s34, %s41
      %p361 = scmp.eq.s32.totalorder %s360, 0
      %s363 = sadd.s32 %s362, 1
      %s364 = scalar_select %p361, %s362, %s363
      %p367 = pneg %p361
      %p368 = scmp.eq.s32.totalorder %s34, 1
      %p369 = por %p367, %p368
      %p370 = scmp.ne.s32.totalorder %s362, %s365
      %p371 = scmp.eq.s32.totalorder %s34, 0
      %p372 = por %p370, %p371
      %p373 = scmp.ne.s32.totalorder %s362, %s365
      %p374 = scmp.eq.s32.totalorder %s39, 1
      %p375 = por %p373, %p374
      %p376 = scmp.ne.s32.totalorder %s365, %s366
      %p377 = scmp.eq.s32.totalorder %s39, 0
      %p378 = por %p376, %p377
      %p379 = scmp.ne.s32.totalorder %s365, %s366
      %p380 = scmp.eq.s32.totalorder %s40, 1
      %p381 = por %p379, %p380
      %p383 = scmp.ne.s32.totalorder %s366, %s382
      %p384 = scmp.eq.s32.totalorder %s40, 0
      %p385 = por %p383, %p384
      %s386 = ssub.s32 %s34, %s41
      %p387 = scmp.eq.s32.totalorder %s386, 0
      %s389 = sadd.s32 %s388, 1
      %s390 = scalar_select %p387, %s388, %s389
      %p393 = pneg %p387
      %p394 = scmp.eq.s32.totalorder %s34, 1
      %p395 = por %p393, %p394
      %p396 = scmp.ne.s32.totalorder %s388, %s391
      %p397 = scmp.eq.s32.totalorder %s34, 0
      %p398 = por %p396, %p397
      %p399 = scmp.ne.s32.totalorder %s388, %s391
      %p400 = scmp.eq.s32.totalorder %s39, 1
      %p401 = por %p399, %p400
      %p402 = scmp.ne.s32.totalorder %s391, %s392
      %p403 = scmp.eq.s32.totalorder %s39, 0
      %p404 = por %p402, %p403
      %p405 = scmp.ne.s32.totalorder %s391, %s392
      %p406 = scmp.eq.s32.totalorder %s40, 1
      %p407 = por %p405, %p406
      %p409 = scmp.ne.s32.totalorder %s392, %s408
      %p410 = scmp.eq.s32.totalorder %s40, 0
      %p411 = por %p409, %p410
      %s412 = ssub.s32 %s34, %s41
      %p413 = scmp.eq.s32.totalorder %s412, 0
      %s415 = sadd.s32 %s414, 1
      %s416 = scalar_select %p413, %s414, %s415
      %p419 = pneg %p413
      %p420 = scmp.eq.s32.totalorder %s34, 1
      %p421 = por %p419, %p420
      %p422 = scmp.ne.s32.totalorder %s414, %s417
      %p423 = scmp.eq.s32.totalorder %s34, 0
      %p424 = por %p422, %p423
      %p425 = scmp.ne.s32.totalorder %s414, %s417
      %p426 = scmp.eq.s32.totalorder %s39, 1
      %p427 = por %p425, %p426
      %p428 = scmp.ne.s32.totalorder %s417, %s418
      %p429 = scmp.eq.s32.totalorder %s39, 0
      %p430 = por %p428, %p429
      %p431 = scmp.ne.s32.totalorder %s417, %s418
      %p432 = scmp.eq.s32.totalorder %s40, 1
      %p433 = por %p431, %p432
      %p435 = scmp.ne.s32.totalorder %s418, %s434
      %p436 = scmp.eq.s32.totalorder %s40, 0
      %p437 = por %p435, %p436
      %s439 = sadd.s32 %s438, 1
      %p442 = scmp.eq.s32.totalorder %s34, 1
      %p443 = scmp.ne.s32.totalorder %s438, %s440
      %p444 = scmp.eq.s32.totalorder %s34, 0
      %p445 = por %p443, %p444
      %p446 = scmp.ne.s32.totalorder %s438, %s440
      %p447 = scmp.eq.s32.totalorder %s39, 1
      %p448 = por %p446, %p447
      %p449 = scmp.ne.s32.totalorder %s440, %s441
      %p450 = scmp.eq.s32.totalorder %s39, 0
      %p451 = por %p449, %p450
      %p452 = scmp.ne.s32.totalorder %s440, %s441
      %p453 = scmp.eq.s32.totalorder %s40, 1
      %p454 = por %p452, %p453
      %p456 = scmp.ne.s32.totalorder %s441, %s455
      %p457 = scmp.eq.s32.totalorder %s40, 0
      %p458 = por %p456, %p457
      %s460 = sadd.s32 %s459, 1
      %p463 = scmp.eq.s32.totalorder %s34, 1
      %p464 = scmp.ne.s32.totalorder %s459, %s461
      %p465 = scmp.eq.s32.totalorder %s34, 0
      %p466 = por %p464, %p465
      %p467 = scmp.ne.s32.totalorder %s459, %s461
      %p468 = scmp.eq.s32.totalorder %s39, 1
      %p469 = por %p467, %p468
      %p470 = scmp.ne.s32.totalorder %s461, %s462
      %p471 = scmp.eq.s32.totalorder %s39, 0
      %p472 = por %p470, %p471
      %p473 = scmp.ne.s32.totalorder %s461, %s462
      %p474 = scmp.eq.s32.totalorder %s40, 1
      %p475 = por %p473, %p474
      %p477 = scmp.ne.s32.totalorder %s462, %s476
      %p478 = scmp.eq.s32.totalorder %s40, 0
      %p479 = por %p477, %p478
      %s481 = sadd.s32 %s480, 1
      %p484 = scmp.eq.s32.totalorder %s34, 1
      %p485 = scmp.ne.s32.totalorder %s480, %s482
      %p486 = scmp.eq.s32.totalorder %s34, 0
      %p487 = por %p485, %p486
      %p488 = scmp.ne.s32.totalorder %s480, %s482
      %p489 = scmp.eq.s32.totalorder %s39, 1
      %p490 = por %p488, %p489
      %p491 = scmp.ne.s32.totalorder %s482, %s483
      %p492 = scmp.eq.s32.totalorder %s39, 0
      %p493 = por %p491, %p492
      %p494 = scmp.ne.s32.totalorder %s482, %s483
      %p495 = scmp.eq.s32.totalorder %s40, 1
      %p496 = por %p494, %p495
      %p498 = scmp.ne.s32.totalorder %s483, %s497
      %p499 = scmp.eq.s32.totalorder %s40, 0
      %p500 = por %p498, %p499
      %s502 = sadd.s32 %s501, 1
      %p505 = scmp.eq.s32.totalorder %s34, 1
      %p506 = scmp.ne.s32.totalorder %s501, %s503
      %p507 = scmp.eq.s32.totalorder %s34, 0
      %p508 = por %p506, %p507
      %p509 = scmp.ne.s32.totalorder %s501, %s503
      %p510 = scmp.eq.s32.totalorder %s39, 1
      %p511 = por %p509, %p510
      %p512 = scmp.ne.s32.totalorder %s503, %s504
      %p513 = scmp.eq.s32.totalorder %s39, 0
      %p514 = por %p512, %p513
      %p515 = scmp.ne.s32.totalorder %s503, %s504
      %p516 = scmp.eq.s32.totalorder %s40, 1
      %p517 = por %p515, %p516
      %p519 = scmp.ne.s32.totalorder %s504, %s518
      %p520 = scmp.eq.s32.totalorder %s40, 0
      %p521 = por %p519, %p520
      %s523 = sadd.s32 %s522, 1
      %p526 = scmp.eq.s32.totalorder %s34, 1
      %p527 = scmp.ne.s32.totalorder %s522, %s524
      %p528 = scmp.eq.s32.totalorder %s34, 0
      %p529 = por %p527, %p528
      %p530 = scmp.ne.s32.totalorder %s522, %s524
      %p531 = scmp.eq.s32.totalorder %s39, 1
      %p532 = por %p530, %p531
      %p533 = scmp.ne.s32.totalorder %s524, %s525
      %p534 = scmp.eq.s32.totalorder %s39, 0
      %p535 = por %p533, %p534
      %p536 = scmp.ne.s32.totalorder %s524, %s525
      %p537 = scmp.eq.s32.totalorder %s40, 1
      %p538 = por %p536, %p537
      %p540 = scmp.ne.s32.totalorder %s525, %s539
      %p541 = scmp.eq.s32.totalorder %s40, 0
      %p542 = por %p540, %p541
      %p543 = scmp.le.s32.totalorder 1, %s34
      %p544 = scmp.lt.s32.totalorder %s34, 3
      %p545 = pnand %p543, %p544
      %p546 = pneg %p545
      // Predicated region
      $region9: #{bert_classifier_forward.1} parent=5 // pred_check
        _
      $region10: #{bert_classifier_forward.1} parent=5 // pred_check_branch
        %548 = sbr.rel (%p545) target = $region12
      $region11: #{bert_classifier_forward.1} parent=5 // pred_region
        %s549 = ssub.s32 %s34, 1
        // Predicated region
        $region13: #{bert_classifier_forward.1} parent=11 // pred_check
          %p550 = pneg %p55
        $region14: #{bert_classifier_forward.1} parent=11 // pred_check_branch
          %552 = sbr.rel (%p550) target = $region16
        $region15: #{bert_classifier_forward.1} parent=11 // pred_region
          _
        $region16: #{bert_classifier_forward.1} parent=11 // pred_fallthru
          _
        // Predicated region
        $region17: #{bert_classifier_forward.1} parent=11 // pred_check
          %p553 = pneg %p76
        $region18: #{bert_classifier_forward.1} parent=11 // pred_check_branch
          %555 = sbr.rel (%p553) target = $region20
        $region19: #{bert_classifier_forward.1} parent=11 // pred_region
          _
        $region20: #{bert_classifier_forward.1} parent=11 // pred_fallthru
          _
        // Predicated region
        $region21: #{bert_classifier_forward.1} parent=11 // pred_check
          %p556 = pneg %p97
        $region22: #{bert_classifier_forward.1} parent=11 // pred_check_branch
          %558 = sbr.rel (%p556) target = $region24
        $region23: #{bert_classifier_forward.1} parent=11 // pred_region
          _
        $region24: #{bert_classifier_forward.1} parent=11 // pred_fallthru
          _
        // Predicated region
        $region25: #{bert_classifier_forward.1} parent=11 // pred_check
          %p559 = pneg %p118
        $region26: #{bert_classifier_forward.1} parent=11 // pred_check_branch
          %561 = sbr.rel (%p559) target = $region28
        $region27: #{bert_classifier_forward.1} parent=11 // pred_region
          _
        $region28: #{bert_classifier_forward.1} parent=11 // pred_fallthru
          _
        // Predicated region
        $region29: #{bert_classifier_forward.1} parent=11 // pred_check
          %p562 = pneg %p451
        $region30: #{bert_classifier_forward.1} parent=11 // pred_check_branch
          %564 = sbr.rel (%p562) target = $region32
        $region31: #{bert_classifier_forward.1} parent=11 // pred_region
          _
        $region32: #{bert_classifier_forward.1} parent=11 // pred_fallthru
          _
        // Predicated region
        $region33: #{bert_classifier_forward.1} parent=11 // pred_check
          %p565 = pneg %p472
        $region34: #{bert_classifier_forward.1} parent=11 // pred_check_branch
          %567 = sbr.rel (%p565) target = $region36
        $region35: #{bert_classifier_forward.1} parent=11 // pred_region
          _
        $region36: #{bert_classifier_forward.1} parent=11 // pred_fallthru
          _
        // Predicated region
        $region37: #{bert_classifier_forward.1} parent=11 // pred_check
          %p568 = pneg %p493
        $region38: #{bert_classifier_forward.1} parent=11 // pred_check_branch
          %570 = sbr.rel (%p568) target = $region40
        $region39: #{bert_classifier_forward.1} parent=11 // pred_region
          %572 = vsyncadd [#allocation10], 0
          %s573 = sshll.u32 %s18, 4
          %s574 = int_to_ptr.hbm [resolvable:$true] %s573
          %s575 = sshll.u32 [#allocation9], 4
          %s576 = int_to_ptr.vmem [resolvable:$true] %s575
          %581 = dma.hbm_to_vmem [thread:$0]  %s574, 1024, %s576, [#allocation10], 64, 64, 4
        $region40: #{bert_classifier_forward.1} parent=11 // pred_fallthru
          _
        // Predicated region
        $region41: #{bert_classifier_forward.1} parent=11 // pred_check
          %p582 = pneg %p514
        $region42: #{bert_classifier_forward.1} parent=11 // pred_check_branch
          %584 = sbr.rel (%p582) target = $region44
        $region43: #{bert_classifier_forward.1} parent=11 // pred_region
          _
        $region44: #{bert_classifier_forward.1} parent=11 // pred_fallthru
          _
      $region12: #{bert_classifier_forward.1} parent=5 // pred_fallthru
        _
      %p585 = scmp.lt.s32.totalorder %s34, 2
      // Predicated region
      $region45: #{bert_classifier_forward.1} parent=5 // pred_check
        %p586 = pneg %p585
      $region46: #{bert_classifier_forward.1} parent=5 // pred_check_branch
        %588 = sbr.rel (%p586) target = $region48
      $region47: #{bert_classifier_forward.1} parent=5 // pred_region
        // Predicated region
        $region49: #{bert_classifier_forward.1} parent=47 // pred_check
          %p589 = pneg %p138
        $region50: #{bert_classifier_forward.1} parent=47 // pred_check_branch
          %591 = sbr.rel (%p589) target = $region52
        $region51: #{bert_classifier_forward.1} parent=47 // pred_region
          %s592 = sand.u32 %s128, 1
          %s593 = scalar_lea.sflag [#allocation4], %s592
          %s594 = sand.u32 %s128, 1
          %s595 = smul.addr %s594, 192
          %s596 = scalar_lea.vmem [#allocation3], %s595
          %598 = vsyncadd %s593, 0
          %s599 = smul.addr %s34, 48
          %s600 = smul.addr %s599, 4
          %s601 = scalar_lea.hbm %s4, %s600
          %s602 = sshll.u32 %s601, 4
          %s603 = int_to_ptr.hbm [resolvable:$true] %s602
          %s604 = sshll.u32 %s596, 4
          %s605 = int_to_ptr.vmem [resolvable:$true] %s604
          %610 = dma.hbm_to_vmem [thread:$0]  %s603, 3072, %s605, %s593, 192, 192, 12
        $region52: #{bert_classifier_forward.1} parent=47 // pred_fallthru
          _
        // Predicated region
        $region53: #{bert_classifier_forward.1} parent=47 // pred_check
          %p611 = pneg %p164
        $region54: #{bert_classifier_forward.1} parent=47 // pred_check_branch
          %613 = sbr.rel (%p611) target = $region56
        $region55: #{bert_classifier_forward.1} parent=47 // pred_region
          %p614 = scmp.lt.s32.totalorder %s34, 1
          %s615 = scalar_select %p614, %s34, 1
          %s616 = smul.addr %s615, 3
          %s617 = scalar_lea.vmem %s5, %s616
        $region56: #{bert_classifier_forward.1} parent=47 // pred_fallthru
          _
        // Predicated region
        $region57: #{bert_classifier_forward.1} parent=47 // pred_check
          %p618 = pneg %p190
        $region58: #{bert_classifier_forward.1} parent=47 // pred_check_branch
          %620 = sbr.rel (%p618) target = $region60
        $region59: #{bert_classifier_forward.1} parent=47 // pred_region
          %p621 = scmp.lt.s32.totalorder %s34, 1
          %s622 = scalar_select %p621, %s34, 1
          %s623 = smul.addr %s622, 16
          %s624 = smul.addr %s623, 4
          %s625 = scalar_lea.vmem %s6, %s624
        $region60: #{bert_classifier_forward.1} parent=47 // pred_fallthru
          _
        // Predicated region
        $region61: #{bert_classifier_forward.1} parent=47 // pred_check
          %p626 = pneg %p216
        $region62: #{bert_classifier_forward.1} parent=47 // pred_check_branch
          %628 = sbr.rel (%p626) target = $region64
        $region63: #{bert_classifier_forward.1} parent=47 // pred_region
          %p629 = scmp.lt.s32.totalorder %s34, 1
          %s630 = scalar_select %p629, %s34, 1
          %s631 = scalar_lea.vmem %s7, %s630
        $region64: #{bert_classifier_forward.1} parent=47 // pred_fallthru
          _
        // Predicated region
        $region65: #{bert_classifier_forward.1} parent=47 // pred_check
          %p632 = pneg %p242
        $region66: #{bert_classifier_forward.1} parent=47 // pred_check_branch
          %634 = sbr.rel (%p632) target = $region68
        $region67: #{bert_classifier_forward.1} parent=47 // pred_region
          %p635 = scmp.lt.s32.totalorder %s34, 1
          %s636 = scalar_select %p635, %s34, 1
          %s637 = scalar_lea.vmem %s8, %s636
        $region68: #{bert_classifier_forward.1} parent=47 // pred_fallthru
          _
        // Predicated region
        $region69: #{bert_classifier_forward.1} parent=47 // pred_check
          %p638 = pneg %p268
        $region70: #{bert_classifier_forward.1} parent=47 // pred_check_branch
          %640 = sbr.rel (%p638) target = $region72
        $region71: #{bert_classifier_forward.1} parent=47 // pred_region
          %p641 = scmp.lt.s32.totalorder %s34, 1
          %s642 = scalar_select %p641, %s34, 1
          %s643 = scalar_lea.vmem %s9, %s642
        $region72: #{bert_classifier_forward.1} parent=47 // pred_fallthru
          _
        // Predicated region
        $region73: #{bert_classifier_forward.1} parent=47 // pred_check
          %p644 = pneg %p294
        $region74: #{bert_classifier_forward.1} parent=47 // pred_check_branch
          %646 = sbr.rel (%p644) target = $region76
        $region75: #{bert_classifier_forward.1} parent=47 // pred_region
          %s647 = sand.u32 %s34, 1
          %s648 = scalar_lea.sflag [#allocation7], %s647
          %s649 = sand.u32 %s284, 1
          %s650 = smul.addr %s649, 128
          %s651 = scalar_lea.vmem [#allocation6], %s650
          %653 = vsyncadd %s648, 0
          %s654 = smul.addr %s34, 32
          %s655 = smul.addr %s654, 4
          %s656 = scalar_lea.hbm %s10, %s655
          %s657 = sshll.u32 %s656, 4
          %s658 = int_to_ptr.hbm [resolvable:$true] %s657
          %s659 = sshll.u32 %s651, 4
          %s660 = int_to_ptr.vmem [resolvable:$true] %s659
          %665 = dma.hbm_to_vmem [thread:$0]  %s658, 2048, %s660, %s648, 128, 128, 8
        $region76: #{bert_classifier_forward.1} parent=47 // pred_fallthru
          _
        // Predicated region
        $region77: #{bert_classifier_forward.1} parent=47 // pred_check
          %p666 = pneg %p320
        $region78: #{bert_classifier_forward.1} parent=47 // pred_check_branch
          %668 = sbr.rel (%p666) target = $region80
        $region79: #{bert_classifier_forward.1} parent=47 // pred_region
          %p669 = scmp.lt.s32.totalorder %s34, 1
          %s670 = scalar_select %p669, %s34, 1
          %s671 = smul.addr %s670, 2
          %s672 = scalar_lea.vmem %s11, %s671
        $region80: #{bert_classifier_forward.1} parent=47 // pred_fallthru
          _
        // Predicated region
        $region81: #{bert_classifier_forward.1} parent=47 // pred_check
          %p673 = pneg %p346
        $region82: #{bert_classifier_forward.1} parent=47 // pred_check_branch
          %675 = sbr.rel (%p673) target = $region84
        $region83: #{bert_classifier_forward.1} parent=47 // pred_region
          %s676 = sand.u32 %s34, 1
          %s677 = scalar_lea.sflag [#allocation7], %s676
          %s678 = sand.u32 %s336, 1
          %s679 = smul.addr %s678, 128
          %s680 = scalar_lea.vmem [#allocation8], %s679
          %682 = vsyncadd %s677, 0
          %s683 = smul.addr %s34, 32
          %s684 = smul.addr %s683, 4
          %s685 = scalar_lea.hbm %s12, %s684
          %s686 = sshll.u32 %s685, 4
          %s687 = int_to_ptr.hbm [resolvable:$true] %s686
          %s688 = sshll.u32 %s680, 4
          %s689 = int_to_ptr.vmem [resolvable:$true] %s688
          %694 = dma.hbm_to_vmem [thread:$0]  %s687, 2048, %s689, %s677, 64, 64, 4
        $region84: #{bert_classifier_forward.1} parent=47 // pred_fallthru
          _
        // Predicated region
        $region85: #{bert_classifier_forward.1} parent=47 // pred_check
          %p695 = pneg %p372
        $region86: #{bert_classifier_forward.1} parent=47 // pred_check_branch
          %697 = sbr.rel (%p695) target = $region88
        $region87: #{bert_classifier_forward.1} parent=47 // pred_region
          %p698 = scmp.lt.s32.totalorder %s34, 1
          %s699 = scalar_select %p698, %s34, 1
          %s700 = scalar_lea.vmem %s13, %s699
        $region88: #{bert_classifier_forward.1} parent=47 // pred_fallthru
          _
        // Predicated region
        $region89: #{bert_classifier_forward.1} parent=47 // pred_check
          %p701 = pneg %p398
        $region90: #{bert_classifier_forward.1} parent=47 // pred_check_branch
          %703 = sbr.rel (%p701) target = $region92
        $region91: #{bert_classifier_forward.1} parent=47 // pred_region
          %p704 = scmp.lt.s32.totalorder %s34, 1
          %s705 = scalar_select %p704, %s34, 1
          %s706 = scalar_lea.vmem %s14, %s705
        $region92: #{bert_classifier_forward.1} parent=47 // pred_fallthru
          _
        // Predicated region
        $region93: #{bert_classifier_forward.1} parent=47 // pred_check
          %p707 = pneg %p424
        $region94: #{bert_classifier_forward.1} parent=47 // pred_check_branch
          %709 = sbr.rel (%p707) target = $region96
        $region95: #{bert_classifier_forward.1} parent=47 // pred_region
          %p710 = scmp.lt.s32.totalorder %s34, 1
          %s711 = scalar_select %p710, %s34, 1
          %s712 = scalar_lea.vmem %s15, %s711
        $region96: #{bert_classifier_forward.1} parent=47 // pred_fallthru
          _
      $region48: #{bert_classifier_forward.1} parent=5 // pred_fallthru
        _
      %p713 = scmp.le.s32.totalorder 1, %s34
      %p714 = scmp.lt.s32.totalorder %s34, 3
      %p715 = pnand %p713, %p714
      %p716 = pneg %p715
      // Predicated region
      $region97: #{bert_classifier_forward.1} parent=5 // pred_check
        _
      $region98: #{bert_classifier_forward.1} parent=5 // pred_check_branch
        %718 = sbr.rel (%p715) target = $region100
      $region99: #{bert_classifier_forward.1} parent=5 // pred_region
        %s719 = ssub.s32 %s34, 1
        %s720 = sand.u32 %s131, 1
        %s721 = scalar_lea.sflag [#allocation4], %s720
        %s722 = sand.u32 %s131, 1
        %s723 = smul.addr %s722, 192
        %s724 = scalar_lea.vmem [#allocation3], %s723
        // Predicated region
        $region101: #{bert_classifier_forward.1} parent=99 // pred_check
          %p725 = pneg %p144
        $region102: #{bert_classifier_forward.1} parent=99 // pred_check_branch
          %727 = sbr.rel (%p725) target = $region104
        $region103: #{bert_classifier_forward.1} parent=99 // pred_region
          %729 = dma.done %s721, 3072
        $region104: #{bert_classifier_forward.1} parent=99 // pred_fallthru
          _
        %s730 = sand.u32 %s39, 1
        %s731 = scalar_lea.sflag [#allocation7], %s730
        %s732 = sand.u32 %s287, 1
        %s733 = smul.addr %s732, 128
        %s734 = scalar_lea.vmem [#allocation6], %s733
        // Predicated region
        $region105: #{bert_classifier_forward.1} parent=99 // pred_check
          %p735 = pneg %p300
        $region106: #{bert_classifier_forward.1} parent=99 // pred_check_branch
          %737 = sbr.rel (%p735) target = $region108
        $region107: #{bert_classifier_forward.1} parent=99 // pred_region
          %739 = dma.done %s731, 2048
        $region108: #{bert_classifier_forward.1} parent=99 // pred_fallthru
          _
        %s740 = sand.u32 %s39, 1
        %s741 = scalar_lea.sflag [#allocation7], %s740
        %s742 = sand.u32 %s339, 1
        %s743 = smul.addr %s742, 128
        %s744 = scalar_lea.vmem [#allocation8], %s743
        // Predicated region
        $region109: #{bert_classifier_forward.1} parent=99 // pred_check
          %p745 = pneg %p352
        $region110: #{bert_classifier_forward.1} parent=99 // pred_check_branch
          %747 = sbr.rel (%p745) target = $region112
        $region111: #{bert_classifier_forward.1} parent=99 // pred_region
          %749 = dma.done %s741, 2048
        $region112: #{bert_classifier_forward.1} parent=99 // pred_fallthru
          _
        // Predicated region
        $region113: #{bert_classifier_forward.1} parent=99 // pred_check
          %p750 = pneg %p493
        $region114: #{bert_classifier_forward.1} parent=99 // pred_check_branch
          %752 = sbr.rel (%p750) target = $region116
        $region115: #{bert_classifier_forward.1} parent=99 // pred_region
          %754 = dma.done [#allocation10], 1024
        $region116: #{bert_classifier_forward.1} parent=99 // pred_fallthru
          _
        %p755 = pneg %p55
        %p756 = pneg %p52
        %p757 = pneg %p76
        %p758 = pneg %p73
        %p759 = pneg %p97
        %p760 = pneg %p94
        %p761 = pneg %p118
        %p762 = pneg %p115
        %s763 = sand.u32 %s131, 1
        %s764 = scalar_lea.sflag [#allocation4], %s763
        %s765 = sand.u32 %s131, 1
        %s766 = smul.addr %s765, 192
        %s767 = scalar_lea.vmem [#allocation3], %s766
        %p768 = pneg %p144
        %p769 = pneg %p141
        %p770 = scmp.lt.s32.totalorder %s39, 1
        %s771 = scalar_select %p770, %s39, 1
        %s772 = smul.addr %s771, 3
        %s773 = scalar_lea.vmem %s5, %s772
        %p774 = pneg %p170
        %p775 = pneg %p167
        %p776 = scmp.lt.s32.totalorder %s39, 1
        %s777 = scalar_select %p776, %s39, 1
        %s778 = smul.addr %s777, 16
        %s779 = smul.addr %s778, 4
        %s780 = scalar_lea.vmem %s6, %s779
        %p781 = pneg %p196
        %p782 = pneg %p193
        %p783 = scmp.lt.s32.totalorder %s39, 1
        %s784 = scalar_select %p783, %s39, 1
        %s785 = scalar_lea.vmem %s7, %s784
        %p786 = pneg %p222
        %p787 = pneg %p219
        %p788 = scmp.lt.s32.totalorder %s39, 1
        %s789 = scalar_select %p788, %s39, 1
        %s790 = scalar_lea.vmem %s8, %s789
        %p791 = pneg %p248
        %p792 = pneg %p245
        %p793 = scmp.lt.s32.totalorder %s39, 1
        %s794 = scalar_select %p793, %s39, 1
        %s795 = scalar_lea.vmem %s9, %s794
        %p796 = pneg %p274
        %p797 = pneg %p271
        %s798 = sand.u32 %s39, 1
        %s799 = scalar_lea.sflag [#allocation7], %s798
        %s800 = sand.u32 %s287, 1
        %s801 = smul.addr %s800, 128
        %s802 = scalar_lea.vmem [#allocation6], %s801
        %p803 = pneg %p300
        %p804 = pneg %p297
        %p805 = scmp.lt.s32.totalorder %s39, 1
        %s806 = scalar_select %p805, %s39, 1
        %s807 = smul.addr %s806, 2
        %s808 = scalar_lea.vmem %s11, %s807
        %p809 = pneg %p326
        %p810 = pneg %p323
        %s811 = sand.u32 %s39, 1
        %s812 = scalar_lea.sflag [#allocation7], %s811
        %s813 = sand.u32 %s339, 1
        %s814 = smul.addr %s813, 128
        %s815 = scalar_lea.vmem [#allocation8], %s814
        %p816 = pneg %p352
        %p817 = pneg %p349
        %p818 = scmp.lt.s32.totalorder %s39, 1
        %s819 = scalar_select %p818, %s39, 1
        %s820 = scalar_lea.vmem %s13, %s819
        %p821 = pneg %p378
        %p822 = pneg %p375
        %p823 = scmp.lt.s32.totalorder %s39, 1
        %s824 = scalar_select %p823, %s39, 1
        %s825 = scalar_lea.vmem %s14, %s824
        %p826 = pneg %p404
        %p827 = pneg %p401
        %p828 = scmp.lt.s32.totalorder %s39, 1
        %s829 = scalar_select %p828, %s39, 1
        %s830 = scalar_lea.vmem %s15, %s829
        %p831 = pneg %p430
        %p832 = pneg %p427
        %p833 = pneg %p451
        %p834 = pneg %p448
        %p835 = pneg %p472
        %p836 = pneg %p469
        %p837 = pneg %p493
        %p838 = pneg %p490
        %p839 = pneg %p514
        %p840 = pneg %p511
        %p841 = pneg %p535
        %p842 = pneg %p532
        %p843 = scmp.lt.s32.totalorder %s39, 1
        %s844 = scalar_select %p843, %s39, 1
        %s845 = smul.addr %s844, 3
        %s846 = scalar_lea.vmem %s5, %s845
        %p847 = scmp.lt.s32.totalorder %s39, 1
        %s848 = scalar_select %p847, %s39, 1
        %s849 = smul.addr %s848, 16
        %s850 = smul.addr %s849, 4
        %s851 = scalar_lea.vmem %s6, %s850
        %p852 = scmp.lt.s32.totalorder %s39, 1
        %s853 = scalar_select %p852, %s39, 1
        %s854 = scalar_lea.vmem %s7, %s853
        %p855 = scmp.lt.s32.totalorder %s39, 1
        %s856 = scalar_select %p855, %s39, 1
        %s857 = scalar_lea.vmem %s8, %s856
        %p858 = scmp.lt.s32.totalorder %s39, 1
        %s859 = scalar_select %p858, %s39, 1
        %s860 = scalar_lea.vmem %s9, %s859
        %p861 = scmp.lt.s32.totalorder %s39, 1
        %s862 = scalar_select %p861, %s39, 1
        %s863 = smul.addr %s862, 2
        %s864 = scalar_lea.vmem %s11, %s863
        %p865 = scmp.lt.s32.totalorder %s39, 1
        %s866 = scalar_select %p865, %s39, 1
        %s867 = scalar_lea.vmem %s13, %s866
        %p868 = scmp.lt.s32.totalorder %s39, 1
        %s869 = scalar_select %p868, %s39, 1
        %s870 = scalar_lea.vmem %s14, %s869
        %p871 = scmp.lt.s32.totalorder %s39, 1
        %s872 = scalar_select %p871, %s39, 1
        %s873 = scalar_lea.vmem %s15, %s872
        %p875 = scmp.eq.s32.totalorder %s39, 0
        // Predicated region
        $region117: #{bert_classifier_forward.1} parent=99 // pred_check
          %p876 = pneg %p875
        $region118: #{bert_classifier_forward.1} parent=99 // pred_check_branch
          %878 = sbr.rel (%p876) target = $region120
        $region119: #{bert_classifier_forward.1} parent=99 // pred_region
          %v879 = vld [vmem:[%s1] sm:$0xff]
          %v880 = vld [vmem:[%s1 + $0x8] sm:$0xff]
          %v881 = vld [vmem:[%s2] sm:$0x1]
          %v882 = vld [vmem:[%s3] sm:$0x1]
          %883 = vadd.xlane.f32.xlu0 %v879
          %v884 = vpop.xlane.xlu0 %883
          %885 = vadd.xlane.f32.xlu0 %v880
          %v886 = vpop.xlane.xlu0 %885
          %v887 = vrcp.pop 128.0
          %v888 = vmul.f32 128.0, %v887
          %v889 = vsub.f32 1.0, %v888
          %v890 = vmul.f32 %v887, %v889
          %v891 = vadd.f32 %v887, %v890
          %vm892 = vweird.f32 %v887
          %v893 = vsel %vm892, %v887, %v891
          %v894 = vmul.f32 %v884, %v893
          %v895 = vmul.f32 %v886, %v893
          %v896 = vsub.f32 %v879, %v894
          %v897 = vsub.f32 %v880, %v895
          %v898 = vmul.f32 %v896, %v896
          %v899 = vmul.f32 %v897, %v897
          %900 = vadd.xlane.f32.xlu0 %v898
          %v901 = vpop.xlane.xlu0 %900
          %902 = vadd.xlane.f32.xlu0 %v899
          %v903 = vpop.xlane.xlu0 %902
          %v904 = vmul.f32 %v901, %v893
          %v905 = vmul.f32 %v903, %v893
          %v906 = vadd.f32 %v904, 1e-12
          %v907 = vadd.f32 %v905, 1e-12
          %v908 = vrsqrt.pop %v906
          %v909 = vmul.f32 %v908, %v906
          %v910 = vmul.f32 %v909, %v908
          %v911 = vmul.f32 0.5, %v910
          %v912 = vsub.f32 1.5, %v911
          %v913 = vmul.f32 %v908, %v912
          %vm914 = vweird.f32 %v906
          %vm915 = vweird.f32 %v908
          %vm916 = vmor %vm914, %vm915
          %v917 = vsel %vm916, %v908, %v913
          %v918 = vrsqrt.pop %v907
          %v919 = vmul.f32 %v918, %v907
          %v920 = vmul.f32 %v919, %v918
          %v921 = vmul.f32 0.5, %v920
          %v922 = vsub.f32 1.5, %v921
          %v923 = vmul.f32 %v918, %v922
          %vm924 = vweird.f32 %v907
          %vm925 = vweird.f32 %v918
          %vm926 = vmor %vm924, %vm925
          %v927 = vsel %vm926, %v918, %v923
          %v928 = vmul.f32 %v896, %v917
          %v929 = vmul.f32 %v897, %v927
          %v931 = vperm.slane %v881, 0
          %v933 = vmul.f32 %v928, %v931
          %v934 = vmul.f32 %v929, %v931
          %v936 = vperm.slane %v882, 0
          %v938 = vadd.f32 %v933, %v936
          %v939 = vadd.f32 %v934, %v936
          %940 = vst [vmem:[#allocation2] sm:$0xff] %v938
          %941 = vst [vmem:[#allocation2 + $0x8] sm:$0xff] %v939
        $region120: #{bert_classifier_forward.1} parent=99 // pred_fallthru
          _
        %v942 = vld [vmem:[#allocation2] sm:$0xff]
        %v943 = vld [vmem:[#allocation2 + $0x8] sm:$0xff]
        %v944 = vpack.c.bf16 %v943, %v942
        %v945 = vld [vmem:[%s724] sm:$0xff]
        %v946 = vld [vmem:[%s724 + $0x8] sm:$0xf]
        %v947 = vld [vmem:[%s724 + $0xc] sm:$0xff]
        %v948 = vld [vmem:[%s724 + $0x14] sm:$0xf]
        %v949 = vld [vmem:[%s724 + $0x18] sm:$0xff]
        %v950 = vld [vmem:[%s724 + $0x20] sm:$0xf]
        %v951 = vld [vmem:[%s724 + $0x24] sm:$0xff]
        %v952 = vld [vmem:[%s724 + $0x2c] sm:$0xf]
        %v953 = vld [vmem:[%s724 + $0x30] sm:$0xff]
        %v954 = vld [vmem:[%s724 + $0x38] sm:$0xf]
        %v955 = vld [vmem:[%s724 + $0x3c] sm:$0xff]
        %v956 = vld [vmem:[%s724 + $0x44] sm:$0xf]
        %v957 = vld [vmem:[%s724 + $0x48] sm:$0xff]
        %v958 = vld [vmem:[%s724 + $0x50] sm:$0xf]
        %v959 = vld [vmem:[%s724 + $0x54] sm:$0xff]
        %v960 = vld [vmem:[%s724 + $0x5c] sm:$0xf]
        %v961 = vld [vmem:[%s724 + $0x60] sm:$0xff]
        %v962 = vld [vmem:[%s724 + $0x68] sm:$0xf]
        %v963 = vld [vmem:[%s724 + $0x6c] sm:$0xff]
        %v964 = vld [vmem:[%s724 + $0x74] sm:$0xf]
        %v965 = vld [vmem:[%s724 + $0x78] sm:$0xff]
        %v966 = vld [vmem:[%s724 + $0x80] sm:$0xf]
        %v967 = vld [vmem:[%s724 + $0x84] sm:$0xff]
        %v968 = vld [vmem:[%s724 + $0x8c] sm:$0xf]
        %v969 = vld [vmem:[%s724 + $0x90] sm:$0xff]
        %v970 = vld [vmem:[%s724 + $0x98] sm:$0xf]
        %v971 = vld [vmem:[%s724 + $0x9c] sm:$0xff]
        %v972 = vld [vmem:[%s724 + $0xa4] sm:$0xf]
        %v973 = vld [vmem:[%s724 + $0xa8] sm:$0xff]
        %v974 = vld [vmem:[%s724 + $0xb0] sm:$0xf]
        %v975 = vld [vmem:[%s724 + $0xb4] sm:$0xff]
        %v976 = vld [vmem:[%s724 + $0xbc] sm:$0xf]
        %v977 = vld [vmem:[%s846] sm:$0x7]
        %v979 = vperm.slane %v977, 0
        %v980 = vperm.slane %v977, 1
        %v981 = vperm.slane %v977, 2
        %v1017 = vunpack.c.l.b16 %v945
        %v1018 = vunpack.c.h.b16 %v945
        %v1019 = vunpack.c.l.b16 %v946
        %v1020 = vunpack.c.l.b16 %v947
        %v1021 = vunpack.c.h.b16 %v947
        %v1022 = vunpack.c.l.b16 %v948
        %v1023 = vunpack.c.l.b16 %v949
        %v1024 = vunpack.c.h.b16 %v949
        %v1025 = vunpack.c.l.b16 %v950
        %v1026 = vunpack.c.l.b16 %v951
        %v1027 = vunpack.c.h.b16 %v951
        %v1028 = vunpack.c.l.b16 %v952
        %v1029 = vunpack.c.l.b16 %v953
        %v1030 = vunpack.c.h.b16 %v953
        %v1031 = vunpack.c.l.b16 %v954
        %v1032 = vunpack.c.l.b16 %v955
        %v1033 = vunpack.c.h.b16 %v955
        %v1034 = vunpack.c.l.b16 %v956
        %v1035 = vunpack.c.l.b16 %v957
        %v1036 = vunpack.c.h.b16 %v957
        %v1037 = vunpack.c.l.b16 %v958
        %v1038 = vunpack.c.l.b16 %v959
        %v1039 = vunpack.c.h.b16 %v959
        %v1040 = vunpack.c.l.b16 %v960
        %v1041 = vunpack.c.l.b16 %v961
        %v1042 = vunpack.c.h.b16 %v961
        %v1043 = vunpack.c.l.b16 %v962
        %v1044 = vunpack.c.l.b16 %v963
        %v1045 = vunpack.c.h.b16 %v963
        %v1046 = vunpack.c.l.b16 %v964
        %v1047 = vunpack.c.l.b16 %v965
        %v1048 = vunpack.c.h.b16 %v965
        %v1049 = vunpack.c.l.b16 %v966
        %v1050 = vunpack.c.l.b16 %v967
        %v1051 = vunpack.c.h.b16 %v967
        %v1052 = vunpack.c.l.b16 %v968
        %v1053 = vunpack.c.l.b16 %v969
        %v1054 = vunpack.c.h.b16 %v969
        %v1055 = vunpack.c.l.b16 %v970
        %v1056 = vunpack.c.l.b16 %v971
        %v1057 = vunpack.c.h.b16 %v971
        %v1058 = vunpack.c.l.b16 %v972
        %v1059 = vunpack.c.l.b16 %v973
        %v1060 = vunpack.c.h.b16 %v973
        %v1061 = vunpack.c.l.b16 %v974
        %v1062 = vunpack.c.l.b16 %v975
        %v1063 = vunpack.c.h.b16 %v975
        %v1064 = vunpack.c.l.b16 %v976
        %v1065 = vpack.c.b16 %v1020, %v1017
        %v1066 = vpack.c.b16 %v1021, %v1018
        %v1067 = vpack.c.b16 %v1022, %v1019
        %v1068 = vpack.c.b16 %v1026, %v1023
        %v1069 = vpack.c.b16 %v1027, %v1024
        %v1070 = vpack.c.b16 %v1028, %v1025
        %v1071 = vpack.c.b16 %v1032, %v1029
        %v1072 = vpack.c.b16 %v1033, %v1030
        %v1073 = vpack.c.b16 %v1034, %v1031
        %v1074 = vpack.c.b16 %v1038, %v1035
        %v1075 = vpack.c.b16 %v1039, %v1036
        %v1076 = vpack.c.b16 %v1040, %v1037
        %v1077 = vpack.c.b16 %v1044, %v1041
        %v1078 = vpack.c.b16 %v1045, %v1042
        %v1079 = vpack.c.b16 %v1046, %v1043
        %v1080 = vpack.c.b16 %v1050, %v1047
        %v1081 = vpack.c.b16 %v1051, %v1048
        %v1082 = vpack.c.b16 %v1052, %v1049
        %v1083 = vpack.c.b16 %v1056, %v1053
        %v1084 = vpack.c.b16 %v1057, %v1054
        %v1085 = vpack.c.b16 %v1058, %v1055
        %v1086 = vpack.c.b16 %v1062, %v1059
        %v1087 = vpack.c.b16 %v1063, %v1060
        %v1088 = vpack.c.b16 %v1064, %v1061
        %1113 = vmatpush.bf16.msra.mxu0 %v1086
        %1114 = vmatpush.bf16.msra.mxu0 %v1083
        %1115 = vmatpush.bf16.msra.mxu0 %v1080
        %1116 = vmatpush.bf16.msra.mxu0 %v1077
        %1117 = vmatpush.bf16.msra.mxu0 %v1074
        %1118 = vmatpush.bf16.msra.mxu0 %v1071
        %1119 = vmatpush.bf16.msra.mxu0 %v1068
        %1120 = vmatpush.bf16.msra.mxu0 %v1065
        %1121 = vmatmul.bf16.gmra.mxu0 %v944
        %v1122 = vpop.f32.mrf.mxu0
        %v1123 = vadd.f32 %v979, %v1122
        %v1124 = vpop.f32.mrf.mxu0
        %v1125 = vadd.f32 %v979, %v1124
        %1126 = vdwg.mxu0
        %1127 = vmatpush.bf16.msra.mxu0 %v1087
        %1128 = vmatpush.bf16.msra.mxu0 %v1084
        %1129 = vmatpush.bf16.msra.mxu0 %v1081
        %1130 = vmatpush.bf16.msra.mxu0 %v1078
        %1131 = vmatpush.bf16.msra.mxu0 %v1075
        %1132 = vmatpush.bf16.msra.mxu0 %v1072
        %1133 = vmatpush.bf16.msra.mxu0 %v1069
        %1134 = vmatpush.bf16.msra.mxu0 %v1066
        %1135 = vmatmul.bf16.gmra.mxu0 %v944
        %v1136 = vpop.f32.mrf.mxu0
        %v1137 = vadd.f32 %v980, %v1136
        %v1138 = vpop.f32.mrf.mxu0
        %v1139 = vadd.f32 %v980, %v1138
        %1140 = vdwg.mxu0
        %1141 = vmatpush.bf16.msra.mxu0 %v1088
        %1142 = vmatpush.bf16.msra.mxu0 %v1085
        %1143 = vmatpush.bf16.msra.mxu0 %v1082
        %1144 = vmatpush.bf16.msra.mxu0 %v1079
        %1145 = vmatpush.bf16.msra.mxu0 %v1076
        %1146 = vmatpush.bf16.msra.mxu0 %v1073
        %1147 = vmatpush.bf16.msra.mxu0 %v1070
        %1148 = vmatpush.bf16.msra.mxu0 %v1067
        %1149 = vmatmul.bf16.gmra.mxu0 %v944
        %v1150 = vpop.f32.mrf.mxu0
        %v1151 = vadd.f32 %v981, %v1150
        %v1152 = vpop.f32.mrf.mxu0
        %v1153 = vadd.f32 %v981, %v1152
        %1154 = vdwg.mxu0
        %v1155 = vmul.f32 %v1123, 0.17677669
        %v1156 = vmul.f32 %v1125, 0.17677669
        %v1157 = vld [vmem:[%s0] sm:$0x3]
        %v1158 = vsub.f32 1.0, %v1157
        %v1159 = vmul.f32 %v1158, -1e+09
        %v1161 = vrot.slane %v1159, 1
        %v1162 = vpack.c.bf16 %v1155, %v1155
        %v1163 = vpack.c.bf16 %v1156, %v1156
        %v1164 = vpack.c.bf16 %v1137, %v1137
        %v1165 = vpack.c.bf16 %v1139, %v1139
        %v1166 = vpack.c.bf16 %v1151, %v1151
        %v1167 = vpack.c.bf16 %v1153, %v1153
        %v1168 = vperm.slane %v1159, 0
        %v1169 = vperm.slane %v1161, 0
        %vm1172 = vcmask 261120
        %v1174 = vsel %vm1172, %v1162, 0
        %v1177 = vsel %vm1172, %v1164, 0
        %1179 = vmatpush.bf16.xpose.msra.mxu0 0
        %1180 = vmatpush.bf16.xpose.msra.mxu0 0
        %1181 = vmatpush.bf16.xpose.msra.mxu0 0
        %1182 = vmatpush.bf16.xpose.msra.mxu0 0
        %1183 = vmatpush.bf16.xpose.msra.mxu0 0
        %1184 = vmatpush.bf16.xpose.msra.mxu0 0
        %1185 = vmatpush.bf16.xpose.msra.mxu0 0
        %1186 = vmatpush.bf16.xpose.msra.mxu0 %v1177
        %1187 = vmatmul.bf16.gmra.mxu0 %v1174
        %v1188 = vpop.f32.mrf.mxu0
        %v1189 = vadd.f32 %v1168, %v1188
        %v1190 = vpop.f32.mrf.mxu0
        %1191 = vdwg.mxu0
        %v1193 = vsel %vm1172, %v1163, 0
        %v1196 = vsel %vm1172, %v1165, 0
        %1198 = vmatpush.bf16.xpose.msra.mxu0 0
        %1199 = vmatpush.bf16.xpose.msra.mxu0 0
        %1200 = vmatpush.bf16.xpose.msra.mxu0 0
        %1201 = vmatpush.bf16.xpose.msra.mxu0 0
        %1202 = vmatpush.bf16.xpose.msra.mxu0 0
        %1203 = vmatpush.bf16.xpose.msra.mxu0 0
        %1204 = vmatpush.bf16.xpose.msra.mxu0 0
        %1205 = vmatpush.bf16.xpose.msra.mxu0 %v1196
        %1206 = vmatmul.bf16.gmra.mxu0 %v1193
        %v1207 = vpop.f32.mrf.mxu0
        %v1208 = vadd.f32 %v1169, %v1207
        %v1209 = vpop.f32.mrf.mxu0
        %1210 = vdwg.mxu0
        %vm1211 = vcmask 64512
        %v1212 = vsel %vm1211, %v1189, -inf
        %1213 = vmax.xlane.f32.xlu0 %v1212
        %v1214 = vpop.xlane.xlu0 %1213
        %v1215 = vsel %vm1211, %v1208, -inf
        %1216 = vmax.xlane.f32.xlu0 %v1215
        %v1217 = vpop.xlane.xlu0 %1216
        %v1218 = vsub.f32 %v1189, %v1214
        %v1219 = vsub.f32 %v1208, %v1217
        %v1220 = vmul.f32 %v1218, 1.442695
        %v1221 = vpow.pop %v1220
        %v1222 = vmul.f32 %v1219, 1.442695
        %v1223 = vpow.pop %v1222
        %v1224 = vsel %vm1211, %v1221, 0.0
        %1225 = vadd.xlane.f32.xlu0 %v1224
        %v1226 = vpop.xlane.xlu0 %1225
        %v1227 = vsel %vm1211, %v1223, 0.0
        %1228 = vadd.xlane.f32.xlu0 %v1227
        %v1229 = vpop.xlane.xlu0 %1228
        %v1230 = vrcp.pop %v1226
        %v1231 = vrcp.pop %v1229
        %v1232 = vmul.f32 %v1221, %v1230
        %v1233 = vmul.f32 %v1223, %v1231
        %v1234 = vpack.c.bf16 %v1232, %v1232
        %v1235 = vpack.c.bf16 %v1233, %v1233
        %v1237 = vsel %vm1211, %v1234, 0
        %vm1239 = vcmask 1043456
        %v1241 = vsel %vm1239, %v1166, 0
        %1243 = vmatpush.bf16.msra.mxu0 0
        %1244 = vmatpush.bf16.msra.mxu0 0
        %1245 = vmatpush.bf16.msra.mxu0 0
        %1246 = vmatpush.bf16.msra.mxu0 0
        %1247 = vmatpush.bf16.msra.mxu0 0
        %1248 = vmatpush.bf16.msra.mxu0 0
        %1249 = vmatpush.bf16.msra.mxu0 0
        %1250 = vmatpush.bf16.msra.mxu0 %v1241
        %1251 = vmatmul.bf16.gmra.mxu0 %v1237
        %v1252 = vpop.f32.mrf.mxu0
        %v1253 = vadd.f32 0.0, %v1252
        %v1254 = vpop.f32.mrf.mxu0
        %1255 = vdwg.mxu0
        %v1257 = vsel %vm1211, %v1235, 0
        %v1260 = vsel %vm1239, %v1167, 0
        %1262 = vmatpush.bf16.msra.mxu0 0
        %1263 = vmatpush.bf16.msra.mxu0 0
        %1264 = vmatpush.bf16.msra.mxu0 0
        %1265 = vmatpush.bf16.msra.mxu0 0
        %1266 = vmatpush.bf16.msra.mxu0 0
        %1267 = vmatpush.bf16.msra.mxu0 0
        %1268 = vmatpush.bf16.msra.mxu0 0
        %1269 = vmatpush.bf16.msra.mxu0 %v1260
        %1270 = vmatmul.bf16.gmra.mxu0 %v1257
        %v1271 = vpop.f32.mrf.mxu0
        %v1272 = vadd.f32 0.0, %v1271
        %v1273 = vpop.f32.mrf.mxu0
        %1274 = vdwg.mxu0
        %v1276 = vunpack.c.l.b16 %v1162
        %v1277 = vpack.c.b16 %v1276, %v1276
        %1278 = vrot.lane.b32.xlu0 %v1277, 96
        %v1279 = vpop.permute.xlu0 %1278
        %v1281 = vunpack.c.l.b16 %v1164
        %v1282 = vpack.c.b16 %v1281, %v1281
        %1283 = vrot.lane.b32.xlu0 %v1282, 96
        %v1284 = vpop.permute.xlu0 %1283
        %v1286 = vsel %vm1172, %v1279, 0
        %v1289 = vsel %vm1172, %v1284, 0
        %1291 = vmatpush.bf16.xpose.msra.mxu0 0
        %1292 = vmatpush.bf16.xpose.msra.mxu0 0
        %1293 = vmatpush.bf16.xpose.msra.mxu0 0
        %1294 = vmatpush.bf16.xpose.msra.mxu0 0
        %1295 = vmatpush.bf16.xpose.msra.mxu0 0
        %1296 = vmatpush.bf16.xpose.msra.mxu0 0
        %1297 = vmatpush.bf16.xpose.msra.mxu0 0
        %1298 = vmatpush.bf16.xpose.msra.mxu0 %v1289
        %1299 = vmatmul.bf16.gmra.mxu0 %v1286
        %v1300 = vpop.f32.mrf.mxu0
        %v1301 = vadd.f32 %v1168, %v1300
        %v1302 = vpop.f32.mrf.mxu0
        %1303 = vdwg.mxu0
        %v1305 = vunpack.c.l.b16 %v1163
        %v1306 = vpack.c.b16 %v1305, %v1305
        %1307 = vrot.lane.b32.xlu0 %v1306, 96
        %v1308 = vpop.permute.xlu0 %1307
        %v1310 = vunpack.c.l.b16 %v1165
        %v1311 = vpack.c.b16 %v1310, %v1310
        %1312 = vrot.lane.b32.xlu0 %v1311, 96
        %v1313 = vpop.permute.xlu0 %1312
        %v1315 = vsel %vm1172, %v1308, 0
        %v1318 = vsel %vm1172, %v1313, 0
        %1320 = vmatpush.bf16.xpose.msra.mxu0 0
        %1321 = vmatpush.bf16.xpose.msra.mxu0 0
        %1322 = vmatpush.bf16.xpose.msra.mxu0 0
        %1323 = vmatpush.bf16.xpose.msra.mxu0 0
        %1324 = vmatpush.bf16.xpose.msra.mxu0 0
        %1325 = vmatpush.bf16.xpose.msra.mxu0 0
        %1326 = vmatpush.bf16.xpose.msra.mxu0 0
        %1327 = vmatpush.bf16.xpose.msra.mxu0 %v1318
        %1328 = vmatmul.bf16.gmra.mxu0 %v1315
        %v1329 = vpop.f32.mrf.mxu0
        %v1330 = vadd.f32 %v1169, %v1329
        %v1331 = vpop.f32.mrf.mxu0
        %1332 = vdwg.mxu0
        %v1333 = vsel %vm1211, %v1301, -inf
        %1334 = vmax.xlane.f32.xlu0 %v1333
        %v1335 = vpop.xlane.xlu0 %1334
        %v1336 = vsel %vm1211, %v1330, -inf
        %1337 = vmax.xlane.f32.xlu0 %v1336
        %v1338 = vpop.xlane.xlu0 %1337
        %v1339 = vsub.f32 %v1301, %v1335
        %v1340 = vsub.f32 %v1330, %v1338
        %v1341 = vmul.f32 %v1339, 1.442695
        %v1342 = vpow.pop %v1341
        %v1343 = vmul.f32 %v1340, 1.442695
        %v1344 = vpow.pop %v1343
        %v1345 = vsel %vm1211, %v1342, 0.0
        %1346 = vadd.xlane.f32.xlu0 %v1345
        %v1347 = vpop.xlane.xlu0 %1346
        %v1348 = vsel %vm1211, %v1344, 0.0
        %1349 = vadd.xlane.f32.xlu0 %v1348
        %v1350 = vpop.xlane.xlu0 %1349
        %v1351 = vrcp.pop %v1347
        %v1352 = vrcp.pop %v1350
        %v1353 = vmul.f32 %v1342, %v1351
        %v1354 = vmul.f32 %v1344, %v1352
        %v1355 = vpack.c.bf16 %v1353, %v1353
        %v1356 = vpack.c.bf16 %v1354, %v1354
        %v1358 = vunpack.c.l.b16 %v1166
        %v1359 = vpack.c.b16 %v1358, %v1358
        %1360 = vrot.lane.b32.xlu0 %v1359, 96
        %v1361 = vpop.permute.xlu0 %1360
        %v1363 = vsel %vm1211, %v1355, 0
        %v1366 = vsel %vm1239, %v1361, 0
        %1368 = vmatpush.bf16.msra.mxu0 0
        %1369 = vmatpush.bf16.msra.mxu0 0
        %1370 = vmatpush.bf16.msra.mxu0 0
        %1371 = vmatpush.bf16.msra.mxu0 0
        %1372 = vmatpush.bf16.msra.mxu0 0
        %1373 = vmatpush.bf16.msra.mxu0 0
        %1374 = vmatpush.bf16.msra.mxu0 0
        %1375 = vmatpush.bf16.msra.mxu0 %v1366
        %1376 = vmatmul.bf16.gmra.mxu0 %v1363
        %v1377 = vpop.f32.mrf.mxu0
        %v1378 = vadd.f32 0.0, %v1377
        %v1379 = vpop.f32.mrf.mxu0
        %1380 = vdwg.mxu0
        %v1382 = vunpack.c.l.b16 %v1167
        %v1383 = vpack.c.b16 %v1382, %v1382
        %1384 = vrot.lane.b32.xlu0 %v1383, 96
        %v1385 = vpop.permute.xlu0 %1384
        %v1387 = vsel %vm1211, %v1356, 0
        %v1390 = vsel %vm1239, %v1385, 0
        %1392 = vmatpush.bf16.msra.mxu0 0
        %1393 = vmatpush.bf16.msra.mxu0 0
        %1394 = vmatpush.bf16.msra.mxu0 0
        %1395 = vmatpush.bf16.msra.mxu0 0
        %1396 = vmatpush.bf16.msra.mxu0 0
        %1397 = vmatpush.bf16.msra.mxu0 0
        %1398 = vmatpush.bf16.msra.mxu0 0
        %1399 = vmatpush.bf16.msra.mxu0 %v1390
        %1400 = vmatmul.bf16.gmra.mxu0 %v1387
        %v1401 = vpop.f32.mrf.mxu0
        %v1402 = vadd.f32 0.0, %v1401
        %v1403 = vpop.f32.mrf.mxu0
        %1404 = vdwg.mxu0
        %1405 = vrot.lane.b32.xlu0 %v1277, 64
        %v1406 = vpop.permute.xlu0 %1405
        %1407 = vrot.lane.b32.xlu0 %v1282, 64
        %v1408 = vpop.permute.xlu0 %1407
        %v1410 = vsel %vm1172, %v1406, 0
        %v1413 = vsel %vm1172, %v1408, 0
        %1415 = vmatpush.bf16.xpose.msra.mxu0 0
        %1416 = vmatpush.bf16.xpose.msra.mxu0 0
        %1417 = vmatpush.bf16.xpose.msra.mxu0 0
        %1418 = vmatpush.bf16.xpose.msra.mxu0 0
        %1419 = vmatpush.bf16.xpose.msra.mxu0 0
        %1420 = vmatpush.bf16.xpose.msra.mxu0 0
        %1421 = vmatpush.bf16.xpose.msra.mxu0 0
        %1422 = vmatpush.bf16.xpose.msra.mxu0 %v1413
        %1423 = vmatmul.bf16.gmra.mxu0 %v1410
        %v1424 = vpop.f32.mrf.mxu0
        %v1425 = vadd.f32 %v1168, %v1424
        %v1426 = vpop.f32.mrf.mxu0
        %1427 = vdwg.mxu0
        %1428 = vrot.lane.b32.xlu0 %v1306, 64
        %v1429 = vpop.permute.xlu0 %1428
        %1430 = vrot.lane.b32.xlu0 %v1311, 64
        %v1431 = vpop.permute.xlu0 %1430
        %v1433 = vsel %vm1172, %v1429, 0
        %v1436 = vsel %vm1172, %v1431, 0
        %1438 = vmatpush.bf16.xpose.msra.mxu0 0
        %1439 = vmatpush.bf16.xpose.msra.mxu0 0
        %1440 = vmatpush.bf16.xpose.msra.mxu0 0
        %1441 = vmatpush.bf16.xpose.msra.mxu0 0
        %1442 = vmatpush.bf16.xpose.msra.mxu0 0
        %1443 = vmatpush.bf16.xpose.msra.mxu0 0
        %1444 = vmatpush.bf16.xpose.msra.mxu0 0
        %1445 = vmatpush.bf16.xpose.msra.mxu0 %v1436
        %1446 = vmatmul.bf16.gmra.mxu0 %v1433
        %v1447 = vpop.f32.mrf.mxu0
        %v1448 = vadd.f32 %v1169, %v1447
        %v1449 = vpop.f32.mrf.mxu0
        %1450 = vdwg.mxu0
        %v1451 = vsel %vm1211, %v1425, -inf
        %1452 = vmax.xlane.f32.xlu0 %v1451
        %v1453 = vpop.xlane.xlu0 %1452
        %v1454 = vsel %vm1211, %v1448, -inf
        %1455 = vmax.xlane.f32.xlu0 %v1454
        %v1456 = vpop.xlane.xlu0 %1455
        %v1457 = vsub.f32 %v1425, %v1453
        %v1458 = vsub.f32 %v1448, %v1456
        %v1459 = vmul.f32 %v1457, 1.442695
        %v1460 = vpow.pop %v1459
        %v1461 = vmul.f32 %v1458, 1.442695
        %v1462 = vpow.pop %v1461
        %v1463 = vsel %vm1211, %v1460, 0.0
        %1464 = vadd.xlane.f32.xlu0 %v1463
        %v1465 = vpop.xlane.xlu0 %1464
        %v1466 = vsel %vm1211, %v1462, 0.0
        %1467 = vadd.xlane.f32.xlu0 %v1466
        %v1468 = vpop.xlane.xlu0 %1467
        %v1469 = vrcp.pop %v1465
        %v1470 = vrcp.pop %v1468
        %v1471 = vmul.f32 %v1460, %v1469
        %v1472 = vmul.f32 %v1462, %v1470
        %v1473 = vpack.c.bf16 %v1471, %v1471
        %v1474 = vpack.c.bf16 %v1472, %v1472
        %1475 = vrot.lane.b32.xlu0 %v1359, 64
        %v1476 = vpop.permute.xlu0 %1475
        %v1478 = vsel %vm1211, %v1473, 0
        %v1481 = vsel %vm1239, %v1476, 0
        %1483 = vmatpush.bf16.msra.mxu0 0
        %1484 = vmatpush.bf16.msra.mxu0 0
        %1485 = vmatpush.bf16.msra.mxu0 0
        %1486 = vmatpush.bf16.msra.mxu0 0
        %1487 = vmatpush.bf16.msra.mxu0 0
        %1488 = vmatpush.bf16.msra.mxu0 0
        %1489 = vmatpush.bf16.msra.mxu0 0
        %1490 = vmatpush.bf16.msra.mxu0 %v1481
        %1491 = vmatmul.bf16.gmra.mxu0 %v1478
        %v1492 = vpop.f32.mrf.mxu0
        %v1493 = vadd.f32 0.0, %v1492
        %v1494 = vpop.f32.mrf.mxu0
        %1495 = vdwg.mxu0
        %1496 = vrot.lane.b32.xlu0 %v1383, 64
        %v1497 = vpop.permute.xlu0 %1496
        %v1499 = vsel %vm1211, %v1474, 0
        %v1502 = vsel %vm1239, %v1497, 0
        %1504 = vmatpush.bf16.msra.mxu0 0
        %1505 = vmatpush.bf16.msra.mxu0 0
        %1506 = vmatpush.bf16.msra.mxu0 0
        %1507 = vmatpush.bf16.msra.mxu0 0
        %1508 = vmatpush.bf16.msra.mxu0 0
        %1509 = vmatpush.bf16.msra.mxu0 0
        %1510 = vmatpush.bf16.msra.mxu0 0
        %1511 = vmatpush.bf16.msra.mxu0 %v1502
        %1512 = vmatmul.bf16.gmra.mxu0 %v1499
        %v1513 = vpop.f32.mrf.mxu0
        %v1514 = vadd.f32 0.0, %v1513
        %v1515 = vpop.f32.mrf.mxu0
        %1516 = vdwg.mxu0
        %1517 = vrot.lane.b32.xlu0 %v1277, 32
        %v1518 = vpop.permute.xlu0 %1517
        %1519 = vrot.lane.b32.xlu0 %v1282, 32
        %v1520 = vpop.permute.xlu0 %1519
        %v1522 = vsel %vm1172, %v1518, 0
        %v1525 = vsel %vm1172, %v1520, 0
        %1527 = vmatpush.bf16.xpose.msra.mxu0 0
        %1528 = vmatpush.bf16.xpose.msra.mxu0 0
        %1529 = vmatpush.bf16.xpose.msra.mxu0 0
        %1530 = vmatpush.bf16.xpose.msra.mxu0 0
        %1531 = vmatpush.bf16.xpose.msra.mxu0 0
        %1532 = vmatpush.bf16.xpose.msra.mxu0 0
        %1533 = vmatpush.bf16.xpose.msra.mxu0 0
        %1534 = vmatpush.bf16.xpose.msra.mxu0 %v1525
        %1535 = vmatmul.bf16.gmra.mxu0 %v1522
        %v1536 = vpop.f32.mrf.mxu0
        %v1537 = vadd.f32 %v1168, %v1536
        %v1538 = vpop.f32.mrf.mxu0
        %1539 = vdwg.mxu0
        %1540 = vrot.lane.b32.xlu0 %v1306, 32
        %v1541 = vpop.permute.xlu0 %1540
        %1542 = vrot.lane.b32.xlu0 %v1311, 32
        %v1543 = vpop.permute.xlu0 %1542
        %v1545 = vsel %vm1172, %v1541, 0
        %v1548 = vsel %vm1172, %v1543, 0
        %1550 = vmatpush.bf16.xpose.msra.mxu0 0
        %1551 = vmatpush.bf16.xpose.msra.mxu0 0
        %1552 = vmatpush.bf16.xpose.msra.mxu0 0
        %1553 = vmatpush.bf16.xpose.msra.mxu0 0
        %1554 = vmatpush.bf16.xpose.msra.mxu0 0
        %1555 = vmatpush.bf16.xpose.msra.mxu0 0
        %1556 = vmatpush.bf16.xpose.msra.mxu0 0
        %1557 = vmatpush.bf16.xpose.msra.mxu0 %v1548
        %1558 = vmatmul.bf16.gmra.mxu0 %v1545
        %v1559 = vpop.f32.mrf.mxu0
        %v1560 = vadd.f32 %v1169, %v1559
        %v1561 = vpop.f32.mrf.mxu0
        %1562 = vdwg.mxu0
        %v1563 = vsel %vm1211, %v1537, -inf
        %1564 = vmax.xlane.f32.xlu0 %v1563
        %v1565 = vpop.xlane.xlu0 %1564
        %v1566 = vsel %vm1211, %v1560, -inf
        %1567 = vmax.xlane.f32.xlu0 %v1566
        %v1568 = vpop.xlane.xlu0 %1567
        %v1569 = vsub.f32 %v1537, %v1565
        %v1570 = vsub.f32 %v1560, %v1568
        %v1571 = vmul.f32 %v1569, 1.442695
        %v1572 = vpow.pop %v1571
        %v1573 = vmul.f32 %v1570, 1.442695
        %v1574 = vpow.pop %v1573
        %v1575 = vsel %vm1211, %v1572, 0.0
        %1576 = vadd.xlane.f32.xlu0 %v1575
        %v1577 = vpop.xlane.xlu0 %1576
        %v1578 = vsel %vm1211, %v1574, 0.0
        %1579 = vadd.xlane.f32.xlu0 %v1578
        %v1580 = vpop.xlane.xlu0 %1579
        %v1581 = vrcp.pop %v1577
        %v1582 = vrcp.pop %v1580
        %v1583 = vmul.f32 %v1572, %v1581
        %v1584 = vmul.f32 %v1574, %v1582
        %v1585 = vpack.c.bf16 %v1583, %v1583
        %v1586 = vpack.c.bf16 %v1584, %v1584
        %1587 = vrot.lane.b32.xlu0 %v1359, 32
        %v1588 = vpop.permute.xlu0 %1587
        %v1590 = vsel %vm1211, %v1585, 0
        %v1593 = vsel %vm1239, %v1588, 0
        %1595 = vmatpush.bf16.msra.mxu0 0
        %1596 = vmatpush.bf16.msra.mxu0 0
        %1597 = vmatpush.bf16.msra.mxu0 0
        %1598 = vmatpush.bf16.msra.mxu0 0
        %1599 = vmatpush.bf16.msra.mxu0 0
        %1600 = vmatpush.bf16.msra.mxu0 0
        %1601 = vmatpush.bf16.msra.mxu0 0
        %1602 = vmatpush.bf16.msra.mxu0 %v1593
        %1603 = vmatmul.bf16.gmra.mxu0 %v1590
        %v1604 = vpop.f32.mrf.mxu0
        %v1605 = vadd.f32 0.0, %v1604
        %v1606 = vpop.f32.mrf.mxu0
        %1607 = vdwg.mxu0
        %1608 = vrot.lane.b32.xlu0 %v1383, 32
        %v1609 = vpop.permute.xlu0 %1608
        %v1611 = vsel %vm1211, %v1586, 0
        %v1614 = vsel %vm1239, %v1609, 0
        %1616 = vmatpush.bf16.msra.mxu0 0
        %1617 = vmatpush.bf16.msra.mxu0 0
        %1618 = vmatpush.bf16.msra.mxu0 0
        %1619 = vmatpush.bf16.msra.mxu0 0
        %1620 = vmatpush.bf16.msra.mxu0 0
        %1621 = vmatpush.bf16.msra.mxu0 0
        %1622 = vmatpush.bf16.msra.mxu0 0
        %1623 = vmatpush.bf16.msra.mxu0 %v1614
        %1624 = vmatmul.bf16.gmra.mxu0 %v1611
        %v1625 = vpop.f32.mrf.mxu0
        %v1626 = vadd.f32 0.0, %v1625
        %v1627 = vpop.f32.mrf.mxu0
        %1628 = vdwg.mxu0
        %1631 = vrot.lane.b32.xlu0 %v1378, 32
        %v1632 = vpop.permute.xlu0 %1631
        %1633 = vrot.lane.b32.xlu0 %v1402, 32
        %v1634 = vpop.permute.xlu0 %1633
        %1639 = vrot.lane.b32.xlu0 %v1493, 64
        %v1640 = vpop.permute.xlu0 %1639
        %1641 = vrot.lane.b32.xlu0 %v1514, 64
        %v1642 = vpop.permute.xlu0 %1641
        %1647 = vrot.lane.b32.xlu0 %v1605, 96
        %v1648 = vpop.permute.xlu0 %1647
        %1649 = vrot.lane.b32.xlu0 %v1626, 96
        %v1650 = vpop.permute.xlu0 %1649
        %v1653 = vsel %vm1172, %v1253, %v1632
        %v1654 = vsel %vm1172, %v1272, %v1634
        %vm1655 = vcmask 523264
        %v1656 = vsel %vm1655, %v1653, %v1640
        %v1657 = vsel %vm1655, %v1654, %v1642
        %vm1658 = vcmask 785408
        %v1659 = vsel %vm1658, %v1656, %v1648
        %v1660 = vsel %vm1658, %v1657, %v1650
        %v1661 = vpack.c.bf16 %v1660, %v1659
        %v1662 = vld [vmem:[%s851] sm:$0xf]
        %v1663 = vld [vmem:[%s851 + $0x4] sm:$0xf]
        %v1664 = vld [vmem:[%s851 + $0x8] sm:$0xf]
        %v1665 = vld [vmem:[%s851 + $0xc] sm:$0xf]
        %v1666 = vld [vmem:[%s851 + $0x10] sm:$0xf]
        %v1667 = vld [vmem:[%s851 + $0x14] sm:$0xf]
        %v1668 = vld [vmem:[%s851 + $0x18] sm:$0xf]
        %v1669 = vld [vmem:[%s851 + $0x1c] sm:$0xf]
        %v1670 = vld [vmem:[%s851 + $0x20] sm:$0xf]
        %v1671 = vld [vmem:[%s851 + $0x24] sm:$0xf]
        %v1672 = vld [vmem:[%s851 + $0x28] sm:$0xf]
        %v1673 = vld [vmem:[%s851 + $0x2c] sm:$0xf]
        %v1674 = vld [vmem:[%s851 + $0x30] sm:$0xf]
        %v1675 = vld [vmem:[%s851 + $0x34] sm:$0xf]
        %v1676 = vld [vmem:[%s851 + $0x38] sm:$0xf]
        %v1677 = vld [vmem:[%s851 + $0x3c] sm:$0xf]
        %v1678 = vld [vmem:[%s854] sm:$0x1]
        %v1680 = vperm.slane %v1678, 0
        %v1698 = vunpack.c.l.b16 %v1662
        %v1699 = vunpack.c.l.b16 %v1663
        %v1700 = vunpack.c.l.b16 %v1664
        %v1701 = vunpack.c.l.b16 %v1665
        %v1702 = vunpack.c.l.b16 %v1666
        %v1703 = vunpack.c.l.b16 %v1667
        %v1704 = vunpack.c.l.b16 %v1668
        %v1705 = vunpack.c.l.b16 %v1669
        %v1706 = vunpack.c.l.b16 %v1670
        %v1707 = vunpack.c.l.b16 %v1671
        %v1708 = vunpack.c.l.b16 %v1672
        %v1709 = vunpack.c.l.b16 %v1673
        %v1710 = vunpack.c.l.b16 %v1674
        %v1711 = vunpack.c.l.b16 %v1675
        %v1712 = vunpack.c.l.b16 %v1676
        %v1713 = vunpack.c.l.b16 %v1677
        %v1714 = vpack.c.b16 %v1699, %v1698
        %v1715 = vpack.c.b16 %v1701, %v1700
        %v1716 = vpack.c.b16 %v1703, %v1702
        %v1717 = vpack.c.b16 %v1705, %v1704
        %v1718 = vpack.c.b16 %v1707, %v1706
        %v1719 = vpack.c.b16 %v1709, %v1708
        %v1720 = vpack.c.b16 %v1711, %v1710
        %v1721 = vpack.c.b16 %v1713, %v1712
        %1730 = vmatpush.bf16.msra.mxu0 %v1721
        %1731 = vmatpush.bf16.msra.mxu0 %v1720
        %1732 = vmatpush.bf16.msra.mxu0 %v1719
        %1733 = vmatpush.bf16.msra.mxu0 %v1718
        %1734 = vmatpush.bf16.msra.mxu0 %v1717
        %1735 = vmatpush.bf16.msra.mxu0 %v1716
        %1736 = vmatpush.bf16.msra.mxu0 %v1715
        %1737 = vmatpush.bf16.msra.mxu0 %v1714
        %1738 = vmatmul.bf16.gmra.mxu0 %v1661
        %v1739 = vpop.f32.mrf.mxu0
        %v1740 = vadd.f32 %v1680, %v1739
        %v1741 = vpop.f32.mrf.mxu0
        %v1742 = vadd.f32 %v1680, %v1741
        %1743 = vdwg.mxu0
        %v1744 = vadd.f32 %v1740, %v942
        %v1745 = vadd.f32 %v1742, %v943
        %v1746 = vld [vmem:[%s857] sm:$0x1]
        %v1747 = vld [vmem:[%s860] sm:$0x1]
        %1748 = vadd.xlane.f32.xlu0 %v1744
        %v1749 = vpop.xlane.xlu0 %1748
        %1750 = vadd.xlane.f32.xlu0 %v1745
        %v1751 = vpop.xlane.xlu0 %1750
        %v1752 = vrcp.pop 128.0
        %v1753 = vmul.f32 128.0, %v1752
        %v1754 = vsub.f32 1.0, %v1753
        %v1755 = vmul.f32 %v1752, %v1754
        %v1756 = vadd.f32 %v1752, %v1755
        %vm1757 = vweird.f32 %v1752
        %v1758 = vsel %vm1757, %v1752, %v1756
        %v1759 = vmul.f32 %v1749, %v1758
        %v1760 = vmul.f32 %v1751, %v1758
        %v1761 = vsub.f32 %v1744, %v1759
        %v1762 = vsub.f32 %v1745, %v1760
        %v1763 = vmul.f32 %v1761, %v1761
        %v1764 = vmul.f32 %v1762, %v1762
        %1765 = vadd.xlane.f32.xlu0 %v1763
        %v1766 = vpop.xlane.xlu0 %1765
        %1767 = vadd.xlane.f32.xlu0 %v1764
        %v1768 = vpop.xlane.xlu0 %1767
        %v1769 = vmul.f32 %v1766, %v1758
        %v1770 = vmul.f32 %v1768, %v1758
        %v1771 = vadd.f32 %v1769, 1e-12
        %v1772 = vadd.f32 %v1770, 1e-12
        %v1773 = vrsqrt.pop %v1771
        %v1774 = vmul.f32 %v1773, %v1771
        %v1775 = vmul.f32 %v1774, %v1773
        %v1776 = vmul.f32 0.5, %v1775
        %v1777 = vsub.f32 1.5, %v1776
        %v1778 = vmul.f32 %v1773, %v1777
        %vm1779 = vweird.f32 %v1771
        %vm1780 = vweird.f32 %v1773
        %vm1781 = vmor %vm1779, %vm1780
        %v1782 = vsel %vm1781, %v1773, %v1778
        %v1783 = vrsqrt.pop %v1772
        %v1784 = vmul.f32 %v1783, %v1772
        %v1785 = vmul.f32 %v1784, %v1783
        %v1786 = vmul.f32 0.5, %v1785
        %v1787 = vsub.f32 1.5, %v1786
        %v1788 = vmul.f32 %v1783, %v1787
        %vm1789 = vweird.f32 %v1772
        %vm1790 = vweird.f32 %v1783
        %vm1791 = vmor %vm1789, %vm1790
        %v1792 = vsel %vm1791, %v1783, %v1788
        %v1793 = vmul.f32 %v1761, %v1782
        %v1794 = vmul.f32 %v1762, %v1792
        %v1796 = vperm.slane %v1746, 0
        %v1798 = vmul.f32 %v1793, %v1796
        %v1799 = vmul.f32 %v1794, %v1796
        %v1801 = vperm.slane %v1747, 0
        %v1803 = vadd.f32 %v1798, %v1801
        %v1804 = vadd.f32 %v1799, %v1801
        %v1805 = vpack.c.bf16 %v1804, %v1803
        %v1806 = vld [vmem:[%s734] sm:$0xff]
        %v1807 = vld [vmem:[%s734 + $0x8] sm:$0xff]
        %v1808 = vld [vmem:[%s734 + $0x10] sm:$0xff]
        %v1809 = vld [vmem:[%s734 + $0x18] sm:$0xff]
        %v1810 = vld [vmem:[%s734 + $0x20] sm:$0xff]
        %v1811 = vld [vmem:[%s734 + $0x28] sm:$0xff]
        %v1812 = vld [vmem:[%s734 + $0x30] sm:$0xff]
        %v1813 = vld [vmem:[%s734 + $0x38] sm:$0xff]
        %v1814 = vld [vmem:[%s734 + $0x40] sm:$0xff]
        %v1815 = vld [vmem:[%s734 + $0x48] sm:$0xff]
        %v1816 = vld [vmem:[%s734 + $0x50] sm:$0xff]
        %v1817 = vld [vmem:[%s734 + $0x58] sm:$0xff]
        %v1818 = vld [vmem:[%s734 + $0x60] sm:$0xff]
        %v1819 = vld [vmem:[%s734 + $0x68] sm:$0xff]
        %v1820 = vld [vmem:[%s734 + $0x70] sm:$0xff]
        %v1821 = vld [vmem:[%s734 + $0x78] sm:$0xff]
        %v1822 = vld [vmem:[%s864] sm:$0x3]
        %v1824 = vperm.slane %v1822, 0
        %v1825 = vperm.slane %v1822, 1
        %v1844 = vunpack.c.l.b16 %v1806
        %v1845 = vunpack.c.h.b16 %v1806
        %v1846 = vunpack.c.l.b16 %v1807
        %v1847 = vunpack.c.h.b16 %v1807
        %v1848 = vunpack.c.l.b16 %v1808
        %v1849 = vunpack.c.h.b16 %v1808
        %v1850 = vunpack.c.l.b16 %v1809
        %v1851 = vunpack.c.h.b16 %v1809
        %v1852 = vunpack.c.l.b16 %v1810
        %v1853 = vunpack.c.h.b16 %v1810
        %v1854 = vunpack.c.l.b16 %v1811
        %v1855 = vunpack.c.h.b16 %v1811
        %v1856 = vunpack.c.l.b16 %v1812
        %v1857 = vunpack.c.h.b16 %v1812
        %v1858 = vunpack.c.l.b16 %v1813
        %v1859 = vunpack.c.h.b16 %v1813
        %v1860 = vunpack.c.l.b16 %v1814
        %v1861 = vunpack.c.h.b16 %v1814
        %v1862 = vunpack.c.l.b16 %v1815
        %v1863 = vunpack.c.h.b16 %v1815
        %v1864 = vunpack.c.l.b16 %v1816
        %v1865 = vunpack.c.h.b16 %v1816
        %v1866 = vunpack.c.l.b16 %v1817
        %v1867 = vunpack.c.h.b16 %v1817
        %v1868 = vunpack.c.l.b16 %v1818
        %v1869 = vunpack.c.h.b16 %v1818
        %v1870 = vunpack.c.l.b16 %v1819
        %v1871 = vunpack.c.h.b16 %v1819
        %v1872 = vunpack.c.l.b16 %v1820
        %v1873 = vunpack.c.h.b16 %v1820
        %v1874 = vunpack.c.l.b16 %v1821
        %v1875 = vunpack.c.h.b16 %v1821
        %v1876 = vpack.c.b16 %v1846, %v1844
        %v1877 = vpack.c.b16 %v1847, %v1845
        %v1878 = vpack.c.b16 %v1850, %v1848
        %v1879 = vpack.c.b16 %v1851, %v1849
        %v1880 = vpack.c.b16 %v1854, %v1852
        %v1881 = vpack.c.b16 %v1855, %v1853
        %v1882 = vpack.c.b16 %v1858, %v1856
        %v1883 = vpack.c.b16 %v1859, %v1857
        %v1884 = vpack.c.b16 %v1862, %v1860
        %v1885 = vpack.c.b16 %v1863, %v1861
        %v1886 = vpack.c.b16 %v1866, %v1864
        %v1887 = vpack.c.b16 %v1867, %v1865
        %v1888 = vpack.c.b16 %v1870, %v1868
        %v1889 = vpack.c.b16 %v1871, %v1869
        %v1890 = vpack.c.b16 %v1874, %v1872
        %v1891 = vpack.c.b16 %v1875, %v1873
        %1908 = vmatpush.bf16.msra.mxu0 %v1890
        %1909 = vmatpush.bf16.msra.mxu0 %v1888
        %1910 = vmatpush.bf16.msra.mxu0 %v1886
        %1911 = vmatpush.bf16.msra.mxu0 %v1884
        %1912 = vmatpush.bf16.msra.mxu0 %v1882
        %1913 = vmatpush.bf16.msra.mxu0 %v1880
        %1914 = vmatpush.bf16.msra.mxu0 %v1878
        %1915 = vmatpush.bf16.msra.mxu0 %v1876
        %1916 = vmatmul.bf16.gmra.mxu0 %v1805
        %v1917 = vpop.f32.mrf.mxu0
        %v1918 = vadd.f32 %v1824, %v1917
        %v1919 = vpop.f32.mrf.mxu0
        %v1920 = vadd.f32 %v1824, %v1919
        %1921 = vdwg.mxu0
        %1922 = vmatpush.bf16.msra.mxu0 %v1891
        %1923 = vmatpush.bf16.msra.mxu0 %v1889
        %1924 = vmatpush.bf16.msra.mxu0 %v1887
        %1925 = vmatpush.bf16.msra.mxu0 %v1885
        %1926 = vmatpush.bf16.msra.mxu0 %v1883
        %1927 = vmatpush.bf16.msra.mxu0 %v1881
        %1928 = vmatpush.bf16.msra.mxu0 %v1879
        %1929 = vmatpush.bf16.msra.mxu0 %v1877
        %1930 = vmatmul.bf16.gmra.mxu0 %v1805
        %v1931 = vpop.f32.mrf.mxu0
        %v1932 = vadd.f32 %v1825, %v1931
        %v1933 = vpop.f32.mrf.mxu0
        %v1934 = vadd.f32 %v1825, %v1933
        %1935 = vdwg.mxu0
        %v1936 = vmul.f32 %v1918, 0.5
        %v1937 = vmul.f32 %v1932, 0.5
        %v1938 = vmul.f32 %v1920, 0.5
        %v1939 = vmul.f32 %v1934, 0.5
        %v1940 = vmul.f32 %v1918, 0.044715
        %v1941 = vmul.f32 %v1932, 0.044715
        %v1942 = vmul.f32 %v1920, 0.044715
        %v1943 = vmul.f32 %v1934, 0.044715
        %v1944 = vmul.f32 %v1940, %v1918
        %v1945 = vmul.f32 %v1941, %v1932
        %v1946 = vmul.f32 %v1942, %v1920
        %v1947 = vmul.f32 %v1943, %v1934
        %v1948 = vmul.f32 %v1944, %v1918
        %v1949 = vmul.f32 %v1945, %v1932
        %v1950 = vmul.f32 %v1946, %v1920
        %v1951 = vmul.f32 %v1947, %v1934
        %v1952 = vadd.f32 %v1918, %v1948
        %v1953 = vadd.f32 %v1932, %v1949
        %v1954 = vadd.f32 %v1920, %v1950
        %v1955 = vadd.f32 %v1934, %v1951
        %v1956 = vmul.f32 %v1952, 0.7978846
        %v1957 = vmul.f32 %v1953, 0.7978846
        %v1958 = vmul.f32 %v1954, 0.7978846
        %v1959 = vmul.f32 %v1955, 0.7978846
        %v1960 = vtanh.pop %v1956
        %v1961 = vtanh.pop %v1957
        %v1962 = vtanh.pop %v1958
        %v1963 = vtanh.pop %v1959
        %v1964 = vadd.f32 %v1960, 1.0
        %v1965 = vadd.f32 %v1961, 1.0
        %v1966 = vadd.f32 %v1962, 1.0
        %v1967 = vadd.f32 %v1963, 1.0
        %v1968 = vmul.f32 %v1936, %v1964
        %v1969 = vmul.f32 %v1937, %v1965
        %v1970 = vmul.f32 %v1938, %v1966
        %v1971 = vmul.f32 %v1939, %v1967
        %v1972 = vpack.c.bf16 %v1970, %v1968
        %v1973 = vpack.c.bf16 %v1971, %v1969
        %v1974 = vld [vmem:[%s744] sm:$0xf]
        %v1975 = vld [vmem:[%s744 + $0x4] sm:$0xf]
        %v1976 = vld [vmem:[%s744 + $0x8] sm:$0xf]
        %v1977 = vld [vmem:[%s744 + $0xc] sm:$0xf]
        %v1978 = vld [vmem:[%s744 + $0x10] sm:$0xf]
        %v1979 = vld [vmem:[%s744 + $0x14] sm:$0xf]
        %v1980 = vld [vmem:[%s744 + $0x18] sm:$0xf]
        %v1981 = vld [vmem:[%s744 + $0x1c] sm:$0xf]
        %v1982 = vld [vmem:[%s744 + $0x20] sm:$0xf]
        %v1983 = vld [vmem:[%s744 + $0x24] sm:$0xf]
        %v1984 = vld [vmem:[%s744 + $0x28] sm:$0xf]
        %v1985 = vld [vmem:[%s744 + $0x2c] sm:$0xf]
        %v1986 = vld [vmem:[%s744 + $0x30] sm:$0xf]
        %v1987 = vld [vmem:[%s744 + $0x34] sm:$0xf]
        %v1988 = vld [vmem:[%s744 + $0x38] sm:$0xf]
        %v1989 = vld [vmem:[%s744 + $0x3c] sm:$0xf]
        %v1990 = vld [vmem:[%s744 + $0x40] sm:$0xf]
        %v1991 = vld [vmem:[%s744 + $0x44] sm:$0xf]
        %v1992 = vld [vmem:[%s744 + $0x48] sm:$0xf]
        %v1993 = vld [vmem:[%s744 + $0x4c] sm:$0xf]
        %v1994 = vld [vmem:[%s744 + $0x50] sm:$0xf]
        %v1995 = vld [vmem:[%s744 + $0x54] sm:$0xf]
        %v1996 = vld [vmem:[%s744 + $0x58] sm:$0xf]
        %v1997 = vld [vmem:[%s744 + $0x5c] sm:$0xf]
        %v1998 = vld [vmem:[%s744 + $0x60] sm:$0xf]
        %v1999 = vld [vmem:[%s744 + $0x64] sm:$0xf]
        %v2000 = vld [vmem:[%s744 + $0x68] sm:$0xf]
        %v2001 = vld [vmem:[%s744 + $0x6c] sm:$0xf]
        %v2002 = vld [vmem:[%s744 + $0x70] sm:$0xf]
        %v2003 = vld [vmem:[%s744 + $0x74] sm:$0xf]
        %v2004 = vld [vmem:[%s744 + $0x78] sm:$0xf]
        %v2005 = vld [vmem:[%s744 + $0x7c] sm:$0xf]
        %v2006 = vld [vmem:[%s867] sm:$0x1]
        %v2008 = vperm.slane %v2006, 0
        %v2042 = vunpack.c.l.b16 %v1974
        %v2043 = vunpack.c.l.b16 %v1975
        %v2044 = vunpack.c.l.b16 %v1976
        %v2045 = vunpack.c.l.b16 %v1977
        %v2046 = vunpack.c.l.b16 %v1978
        %v2047 = vunpack.c.l.b16 %v1979
        %v2048 = vunpack.c.l.b16 %v1980
        %v2049 = vunpack.c.l.b16 %v1981
        %v2050 = vunpack.c.l.b16 %v1982
        %v2051 = vunpack.c.l.b16 %v1983
        %v2052 = vunpack.c.l.b16 %v1984
        %v2053 = vunpack.c.l.b16 %v1985
        %v2054 = vunpack.c.l.b16 %v1986
        %v2055 = vunpack.c.l.b16 %v1987
        %v2056 = vunpack.c.l.b16 %v1988
        %v2057 = vunpack.c.l.b16 %v1989
        %v2058 = vunpack.c.l.b16 %v1990
        %v2059 = vunpack.c.l.b16 %v1991
        %v2060 = vunpack.c.l.b16 %v1992
        %v2061 = vunpack.c.l.b16 %v1993
        %v2062 = vunpack.c.l.b16 %v1994
        %v2063 = vunpack.c.l.b16 %v1995
        %v2064 = vunpack.c.l.b16 %v1996
        %v2065 = vunpack.c.l.b16 %v1997
        %v2066 = vunpack.c.l.b16 %v1998
        %v2067 = vunpack.c.l.b16 %v1999
        %v2068 = vunpack.c.l.b16 %v2000
        %v2069 = vunpack.c.l.b16 %v2001
        %v2070 = vunpack.c.l.b16 %v2002
        %v2071 = vunpack.c.l.b16 %v2003
        %v2072 = vunpack.c.l.b16 %v2004
        %v2073 = vunpack.c.l.b16 %v2005
        %v2074 = vpack.c.b16 %v2043, %v2042
        %v2075 = vpack.c.b16 %v2045, %v2044
        %v2076 = vpack.c.b16 %v2047, %v2046
        %v2077 = vpack.c.b16 %v2049, %v2048
        %v2078 = vpack.c.b16 %v2051, %v2050
        %v2079 = vpack.c.b16 %v2053, %v2052
        %v2080 = vpack.c.b16 %v2055, %v2054
        %v2081 = vpack.c.b16 %v2057, %v2056
        %v2082 = vpack.c.b16 %v2059, %v2058
        %v2083 = vpack.c.b16 %v2061, %v2060
        %v2084 = vpack.c.b16 %v2063, %v2062
        %v2085 = vpack.c.b16 %v2065, %v2064
        %v2086 = vpack.c.b16 %v2067, %v2066
        %v2087 = vpack.c.b16 %v2069, %v2068
        %v2088 = vpack.c.b16 %v2071, %v2070
        %v2089 = vpack.c.b16 %v2073, %v2072
        %2106 = vmatpush.bf16.msra.mxu0 %v2081
        %2107 = vmatpush.bf16.msra.mxu0 %v2080
        %2108 = vmatpush.bf16.msra.mxu0 %v2079
        %2109 = vmatpush.bf16.msra.mxu0 %v2078
        %2110 = vmatpush.bf16.msra.mxu0 %v2077
        %2111 = vmatpush.bf16.msra.mxu0 %v2076
        %2112 = vmatpush.bf16.msra.mxu0 %v2075
        %2113 = vmatpush.bf16.msra.mxu0 %v2074
        %2114 = vmatmul.bf16.gmra.mxu0 %v1972
        %v2115 = vpop.f32.mrf.mxu0
        %v2116 = vadd.f32 %v2008, %v2115
        %v2117 = vpop.f32.mrf.mxu0
        %v2118 = vadd.f32 %v2008, %v2117
        %2119 = vdwg.mxu0
        %2120 = vmatpush.bf16.msra.mxu0 %v2089
        %2121 = vmatpush.bf16.msra.mxu0 %v2088
        %2122 = vmatpush.bf16.msra.mxu0 %v2087
        %2123 = vmatpush.bf16.msra.mxu0 %v2086
        %2124 = vmatpush.bf16.msra.mxu0 %v2085
        %2125 = vmatpush.bf16.msra.mxu0 %v2084
        %2126 = vmatpush.bf16.msra.mxu0 %v2083
        %2127 = vmatpush.bf16.msra.mxu0 %v2082
        %2128 = vmatmul.bf16.gmra.mxu0 %v1973
        %v2129 = vpop.f32.mrf.mxu0
        %v2130 = vadd.f32 %v2116, %v2129
        %v2131 = vpop.f32.mrf.mxu0
        %v2132 = vadd.f32 %v2118, %v2131
        %2133 = vdwg.mxu0
        %v2134 = vadd.f32 %v2130, %v1803
        %v2135 = vadd.f32 %v2132, %v1804
        %v2136 = vld [vmem:[%s870] sm:$0x1]
        %v2137 = vld [vmem:[%s873] sm:$0x1]
        %2138 = vadd.xlane.f32.xlu0 %v2134
        %v2139 = vpop.xlane.xlu0 %2138
        %2140 = vadd.xlane.f32.xlu0 %v2135
        %v2141 = vpop.xlane.xlu0 %2140
        %v2142 = vmul.f32 %v2139, %v1758
        %v2143 = vmul.f32 %v2141, %v1758
        %v2144 = vsub.f32 %v2134, %v2142
        %v2145 = vsub.f32 %v2135, %v2143
        %v2146 = vmul.f32 %v2144, %v2144
        %v2147 = vmul.f32 %v2145, %v2145
        %2148 = vadd.xlane.f32.xlu0 %v2146
        %v2149 = vpop.xlane.xlu0 %2148
        %2150 = vadd.xlane.f32.xlu0 %v2147
        %v2151 = vpop.xlane.xlu0 %2150
        %v2152 = vmul.f32 %v2149, %v1758
        %v2153 = vmul.f32 %v2151, %v1758
        %v2154 = vadd.f32 %v2152, 1e-12
        %v2155 = vadd.f32 %v2153, 1e-12
        %v2156 = vrsqrt.pop %v2154
        %v2157 = vmul.f32 %v2156, %v2154
        %v2158 = vmul.f32 %v2157, %v2156
        %v2159 = vmul.f32 0.5, %v2158
        %v2160 = vsub.f32 1.5, %v2159
        %v2161 = vmul.f32 %v2156, %v2160
        %vm2162 = vweird.f32 %v2154
        %vm2163 = vweird.f32 %v2156
        %vm2164 = vmor %vm2162, %vm2163
        %v2165 = vsel %vm2164, %v2156, %v2161
        %v2166 = vrsqrt.pop %v2155
        %v2167 = vmul.f32 %v2166, %v2155
        %v2168 = vmul.f32 %v2167, %v2166
        %v2169 = vmul.f32 0.5, %v2168
        %v2170 = vsub.f32 1.5, %v2169
        %v2171 = vmul.f32 %v2166, %v2170
        %vm2172 = vweird.f32 %v2155
        %vm2173 = vweird.f32 %v2166
        %vm2174 = vmor %vm2172, %vm2173
        %v2175 = vsel %vm2174, %v2166, %v2171
        %v2176 = vmul.f32 %v2144, %v2165
        %v2177 = vmul.f32 %v2145, %v2175
        %v2179 = vperm.slane %v2136, 0
        %v2181 = vmul.f32 %v2176, %v2179
        %v2182 = vmul.f32 %v2177, %v2179
        %v2184 = vperm.slane %v2137, 0
        %v2186 = vadd.f32 %v2181, %v2184
        %v2187 = vadd.f32 %v2182, %v2184
        %2188 = vst [vmem:[#allocation2] sm:$0xff] %v2186
        %2189 = vst [vmem:[#allocation2 + $0x8] sm:$0xff] %v2187
        %p2190 = scmp.eq.s32.totalorder %s39, 1
        // Predicated region
        $region121: #{bert_classifier_forward.1} parent=99 // pred_check
          %p2191 = pneg %p2190
        $region122: #{bert_classifier_forward.1} parent=99 // pred_check_branch
          %2193 = sbr.rel (%p2191) target = $region124
        $region123: #{bert_classifier_forward.1} parent=99 // pred_region
          %v2194 = vpack.c.bf16 %v2186, %v2186
          %v2195 = vpack.c.bf16 %v2187, %v2187
          %v2196 = vld [vmem:[%s16] sm:$0xf]
          %v2197 = vld [vmem:[%s16 + $0x4] sm:$0xf]
          %v2198 = vld [vmem:[%s16 + $0x8] sm:$0xf]
          %v2199 = vld [vmem:[%s16 + $0xc] sm:$0xf]
          %v2200 = vld [vmem:[%s16 + $0x10] sm:$0xf]
          %v2201 = vld [vmem:[%s16 + $0x14] sm:$0xf]
          %v2202 = vld [vmem:[%s16 + $0x18] sm:$0xf]
          %v2203 = vld [vmem:[%s16 + $0x1c] sm:$0xf]
          %v2204 = vld [vmem:[%s16 + $0x20] sm:$0xf]
          %v2205 = vld [vmem:[%s16 + $0x24] sm:$0xf]
          %v2206 = vld [vmem:[%s16 + $0x28] sm:$0xf]
          %v2207 = vld [vmem:[%s16 + $0x2c] sm:$0xf]
          %v2208 = vld [vmem:[%s16 + $0x30] sm:$0xf]
          %v2209 = vld [vmem:[%s16 + $0x34] sm:$0xf]
          %v2210 = vld [vmem:[%s16 + $0x38] sm:$0xf]
          %v2211 = vld [vmem:[%s16 + $0x3c] sm:$0xf]
          %v2212 = vld [vmem:[%s17] sm:$0x1]
          %v2214 = vperm.slane %v2212, 0
          %v2218 = vunpack.c.l.b16 %v2194
          %v2219 = vunpack.c.l.b16 %v2195
          %v2220 = vrot.slane %v2219, 7
          %vm2221 = vcmask 1041409
          %v2222 = vsel %vm2221, %v2220, %v2218
          %v2223 = vpack.c.b16 %v2222, %v2222
          %v2241 = vunpack.c.l.b16 %v2196
          %v2242 = vunpack.c.l.b16 %v2197
          %v2243 = vunpack.c.l.b16 %v2198
          %v2244 = vunpack.c.l.b16 %v2199
          %v2245 = vunpack.c.l.b16 %v2200
          %v2246 = vunpack.c.l.b16 %v2201
          %v2247 = vunpack.c.l.b16 %v2202
          %v2248 = vunpack.c.l.b16 %v2203
          %v2249 = vunpack.c.l.b16 %v2204
          %v2250 = vunpack.c.l.b16 %v2205
          %v2251 = vunpack.c.l.b16 %v2206
          %v2252 = vunpack.c.l.b16 %v2207
          %v2253 = vunpack.c.l.b16 %v2208
          %v2254 = vunpack.c.l.b16 %v2209
          %v2255 = vunpack.c.l.b16 %v2210
          %v2256 = vunpack.c.l.b16 %v2211
          %v2257 = vpack.c.b16 %v2242, %v2241
          %v2258 = vpack.c.b16 %v2244, %v2243
          %v2259 = vpack.c.b16 %v2246, %v2245
          %v2260 = vpack.c.b16 %v2248, %v2247
          %v2261 = vpack.c.b16 %v2250, %v2249
          %v2262 = vpack.c.b16 %v2252, %v2251
          %v2263 = vpack.c.b16 %v2254, %v2253
          %v2264 = vpack.c.b16 %v2256, %v2255
          %2273 = vmatpush.bf16.msra.mxu0 %v2264
          %2274 = vmatpush.bf16.msra.mxu0 %v2263
          %2275 = vmatpush.bf16.msra.mxu0 %v2262
          %2276 = vmatpush.bf16.msra.mxu0 %v2261
          %2277 = vmatpush.bf16.msra.mxu0 %v2260
          %2278 = vmatpush.bf16.msra.mxu0 %v2259
          %2279 = vmatpush.bf16.msra.mxu0 %v2258
          %2280 = vmatpush.bf16.msra.mxu0 %v2257
          %2281 = vmatmul.bf16.gmra.mxu0 %v2223
          %v2282 = vpop.f32.mrf.mxu0
          %v2283 = vadd.f32 %v2214, %v2282
          %v2284 = vpop.f32.mrf.mxu0
          %2285 = vdwg.mxu0
          %v2286 = vtanh.pop %v2283
          %v2287 = vpack.c.bf16 %v2286, %v2286
          %v2288 = vld [vmem:[#allocation9] sm:$0xf]
          %v2289 = vld [vmem:[#allocation9 + $0x4] sm:$0xf]
          %v2290 = vld [vmem:[#allocation9 + $0x8] sm:$0xf]
          %v2291 = vld [vmem:[#allocation9 + $0xc] sm:$0xf]
          %v2292 = vld [vmem:[#allocation9 + $0x10] sm:$0xf]
          %v2293 = vld [vmem:[#allocation9 + $0x14] sm:$0xf]
          %v2294 = vld [vmem:[#allocation9 + $0x18] sm:$0xf]
          %v2295 = vld [vmem:[#allocation9 + $0x1c] sm:$0xf]
          %v2296 = vld [vmem:[#allocation9 + $0x20] sm:$0xf]
          %v2297 = vld [vmem:[#allocation9 + $0x24] sm:$0xf]
          %v2298 = vld [vmem:[#allocation9 + $0x28] sm:$0xf]
          %v2299 = vld [vmem:[#allocation9 + $0x2c] sm:$0xf]
          %v2300 = vld [vmem:[#allocation9 + $0x30] sm:$0xf]
          %v2301 = vld [vmem:[#allocation9 + $0x34] sm:$0xf]
          %v2302 = vld [vmem:[#allocation9 + $0x38] sm:$0xf]
          %v2303 = vld [vmem:[#allocation9 + $0x3c] sm:$0xf]
          %v2304 = vld [vmem:[%s19] sm:$0x1]
          %v2306 = vperm.slane %v2304, 0
          %v2324 = vunpack.c.l.b16 %v2288
          %v2325 = vunpack.c.l.b16 %v2289
          %v2326 = vunpack.c.l.b16 %v2290
          %v2327 = vunpack.c.l.b16 %v2291
          %v2328 = vunpack.c.l.b16 %v2292
          %v2329 = vunpack.c.l.b16 %v2293
          %v2330 = vunpack.c.l.b16 %v2294
          %v2331 = vunpack.c.l.b16 %v2295
          %v2332 = vunpack.c.l.b16 %v2296
          %v2333 = vunpack.c.l.b16 %v2297
          %v2334 = vunpack.c.l.b16 %v2298
          %v2335 = vunpack.c.l.b16 %v2299
          %v2336 = vunpack.c.l.b16 %v2300
          %v2337 = vunpack.c.l.b16 %v2301
          %v2338 = vunpack.c.l.b16 %v2302
          %v2339 = vunpack.c.l.b16 %v2303
          %v2340 = vpack.c.b16 %v2325, %v2324
          %v2341 = vpack.c.b16 %v2327, %v2326
          %v2342 = vpack.c.b16 %v2329, %v2328
          %v2343 = vpack.c.b16 %v2331, %v2330
          %v2344 = vpack.c.b16 %v2333, %v2332
          %v2345 = vpack.c.b16 %v2335, %v2334
          %v2346 = vpack.c.b16 %v2337, %v2336
          %v2347 = vpack.c.b16 %v2339, %v2338
          %2356 = vmatpush.bf16.msra.mxu0 %v2347
          %2357 = vmatpush.bf16.msra.mxu0 %v2346
          %2358 = vmatpush.bf16.msra.mxu0 %v2345
          %2359 = vmatpush.bf16.msra.mxu0 %v2344
          %2360 = vmatpush.bf16.msra.mxu0 %v2343
          %2361 = vmatpush.bf16.msra.mxu0 %v2342
          %2362 = vmatpush.bf16.msra.mxu0 %v2341
          %2363 = vmatpush.bf16.msra.mxu0 %v2340
          %2364 = vmatmul.bf16.gmra.mxu0 %v2287
          %v2365 = vpop.f32.mrf.mxu0
          %v2366 = vadd.f32 %v2306, %v2365
          %v2367 = vpop.f32.mrf.mxu0
          %2368 = vdwg.mxu0
          %v2369 = vmax.f32 %v2366, 0.0
          %2370 = vst [vmem:[#allocation11] sm:$0x3] %v2369
        $region124: #{bert_classifier_forward.1} parent=99 // pred_fallthru
          _
        // Predicated region
        $region125: #{bert_classifier_forward.1} parent=99 // pred_check
          %p2371 = pneg %p532
        $region126: #{bert_classifier_forward.1} parent=99 // pred_check_branch
          %2373 = sbr.rel (%p2371) target = $region128
        $region127: #{bert_classifier_forward.1} parent=99 // pred_region
          %2375 = vsyncadd [#allocation5], 0
          %s2377 = sshll.u32 [#allocation11], 4
          %s2378 = int_to_ptr.vmem [resolvable:$true] %s2377
          %s2379 = sshll.u32 %s20, 4
          %s2380 = int_to_ptr.hbm [resolvable:$true] %s2379
          %2382 = dma.vmem_to_hbm [thread:$0]  %s2378, 32, %s2380, [#allocation5]
        $region128: #{bert_classifier_forward.1} parent=99 // pred_fallthru
          _
        // Predicated region
        $region129: #{bert_classifier_forward.1} parent=99 // pred_check
          %p2383 = pneg %p532
        $region130: #{bert_classifier_forward.1} parent=99 // pred_check_branch
          %2385 = sbr.rel (%p2383) target = $region132
        $region131: #{bert_classifier_forward.1} parent=99 // pred_region
          %2387 = dma.done [#allocation5], 32
        $region132: #{bert_classifier_forward.1} parent=99 // pred_fallthru
          _
      $region100: #{bert_classifier_forward.1} parent=5 // pred_fallthru
        _
      %p2388 = scmp.le.s32.totalorder 2, %s34
      // Predicated region
      $region133: #{bert_classifier_forward.1} parent=5 // pred_check
        %p2389 = pneg %p2388
      $region134: #{bert_classifier_forward.1} parent=5 // pred_check_branch
        %2391 = sbr.rel (%p2389) target = $region136
      $region135: #{bert_classifier_forward.1} parent=5 // pred_region
        %s2392 = ssub.s32 %s34, 2
      $region136: #{bert_classifier_forward.1} parent=5 // pred_fallthru
        _
    $region6: #{bert_classifier_forward.1} parent=1 // loop_footer
      %s38 = sadd.s32 1, %s34
    $region7: #{bert_classifier_forward.1} parent=1 // loop_footer_branch
      %33 = sbr.rel target = $region3
    $region8: #{bert_classifier_forward.1} parent=1 // loop_exit
      _
    %2393 = vsyncpa [#allocation4], 1
    %s2394 = scalar_lea.sflag [#allocation4], 1
    %2395 = vsyncpa %s2394, 1
    %2396 = vsyncpa [#allocation7], 1
    %s2397 = scalar_lea.sflag [#allocation7], 1
    %2398 = vsyncpa %s2397, 1
    %2399 = vsyncpa [#allocation10], 1
    %2400 = vsyncpa [#allocation5], 1
    %s2401 = scalar_lea.sflag [#allocation5], 1
    %2402 = vsyncpa %s2401, 1

</llo_original>
